<compile_context>
chip_gen: v7x
topology: tpu7x:2x2x1
jax: 0.10.0
libtpu: 0.0.40
codegen_flags: <defaults>
</compile_context>

<pallas_src>
import functools
import math

import jax
import jax.numpy as jnp
from jax.experimental import pallas as pl
from jax.experimental.pallas import tpu as pltpu


# -----------------------------------------------------------------------------
# Fused Pallas kernel: whole forward pass in one invocation.
# -----------------------------------------------------------------------------
def fused_rnn_mlp_kernel(x_ref, layers_ref, head_ref, out_ref):
    """x_ref      : (B, T, D)  batch-first input (whole block in VMEM).
       layers_ref : (L, 4H+8+2H, 2H) packed per-layer [Win | bias | Whh].
       head_ref   : (4H+8+H+8, H)    packed [fc1_fused | b1 | fc2(padded) | b2].
       out_ref    : (B, O).

    Fused-direction scan: step s carries h_s = [f(s) | g(s)] where f(s) is the
    forward hidden at time s and g(s) the backward hidden aligned at T-1-s.
    """
    B, T, D = x_ref.shape
    L = layers_ref.shape[0]
    H2 = layers_ref.shape[2]          # 2*H (fused fwd|bwd width)
    H = H2 // 2
    O = out_ref.shape[1]
    f32 = jnp.float32
    r_bias = 4 * H                    # packed row offsets inside layers_ref
    r_whh = 4 * H + 8

    x = x_ref[...]                                   # (B, T, D)
    seq = [x[:, t, :] for t in range(T)]             # per-step (B, D) slices

    for l in range(L):                               # layers unrolled (L static)
        k_in = 2 * seq[0].shape[1]                   # 2*Din (2D for layer 0, 4H after)
        w_in = layers_ref[l, 0:k_in, :]              # (2*Din, 2H) = vstack([A, Bm])
        bias = layers_ref[l, r_bias:r_bias + 1, :]   # (1, 2H)  b_ih+b_hh, both dirs
        whh = layers_ref[l, r_whh:r_whh + H2, :]     # (2H, 2H) block-diag recurrence

        # -- hoisted, batched input projection: ONE matmul for all T steps --
        # Row block s of `slab` is concat(seq[s], seq[T-1-s]); one dot with
        # vstack([A, Bm]) yields both directions' input pre-activations.
        slab = jnp.concatenate(
            [jnp.concatenate([seq[s], seq[T - 1 - s]], axis=1) for s in range(T)],
            axis=0)                                                  # (T*B, 2*Din)
        u = jnp.dot(slab, w_in, preferred_element_type=f32) + bias   # (T*B, 2H)
        u_steps = [u[s * B:(s + 1) * B, :] for s in range(T)]        # (B, 2H) each

        # -- serial recurrence: one (B,2H)@(2H,2H) dot + tanh per step --
        h = jnp.tanh(u_steps[0])                     # h_{-1} = 0
        hs = [h]
        for s in range(1, T):
            h = jnp.tanh(u_steps[s] + jnp.dot(h, whh, preferred_element_type=f32))
            hs.append(h)
        seq = hs                                     # packed [f(s) | g(s)] per step

    # -- MLP head: fc2(relu(fc1(out[:, -1, :]))) --
    # out[:, -1, :] = [fwd(T-1) | bwd(T-1)] = [f(T-1) | g(0)]; the packed head
    # weight is laid out for concat(seq[T-1], seq[0]), so no lane slicing here.
    w_head = head_ref[0:4 * H, :]                        # (4H, H) fused fc1 weight
    b1 = head_ref[4 * H:4 * H + 1, :]                    # (1, H)
    w2 = head_ref[4 * H + 8:4 * H + 8 + H, :]            # (H, H)  fc2, cols >= O zero
    b2 = head_ref[4 * H + 8 + H:4 * H + 8 + H + 1, :]    # (1, H)
    head_in = jnp.concatenate([seq[T - 1], seq[0]], axis=1)          # (B, 4H)
    z = jnp.maximum(jnp.dot(head_in, w_head, preferred_element_type=f32) + b1, 0.0)
    y = jnp.dot(z, w2, preferred_element_type=f32) + b2              # (B, H)
    out_ref[...] = y[:, :O].astype(out_ref.dtype)


# -----------------------------------------------------------------------------
# One-time parameter preparation / packing (hoisted out of the hot path).
# -----------------------------------------------------------------------------
def prepare_params(params, input_size, hidden_size, output_size):
    H = hidden_size
    L = len(params["rnn"])
    O = output_size
    f32 = jnp.float32
    assert 2 * input_size <= 4 * H, "layer-0 fused input width must fit the packed buffer"

    # Packed layer buffer rows: [0:4H) Win, [4H] bias, [4H+8:6H+8) Whh.
    layer_buf = jnp.zeros((L, 4 * H + 8 + 2 * H, 2 * H), f32)
    for li, layer in enumerate(params["rnn"]):
        (wif, whf, bif, bhf) = layer[0]              # forward direction (PyTorch layout)
        (wib, whb, bib, bhb) = layer[1]              # backward direction
        wif_t, wib_t = wif.T, wib.T                  # (Din, H)
        whf_t, whb_t = whf.T, whb.T                  # (H, H)
        if li == 0:
            z = jnp.zeros((input_size, H), f32)
            A = jnp.concatenate([wif_t, z], axis=1)      # x[s]     -> fwd cols
            Bm = jnp.concatenate([z, wib_t], axis=1)     # x[T-1-s] -> bwd cols
        else:
            # Previous layer's step outputs are packed [f(s) | g(s)] with g(s)
            # aligned at time T-1-s; fold the un-interleave into the blocks.
            A = jnp.zeros((2 * H, 2 * H), f32)
            A = A.at[:H, :H].set(wif_t[:H]).at[H:, H:].set(wib_t[H:])
            Bm = jnp.zeros((2 * H, 2 * H), f32)
            Bm = Bm.at[H:, :H].set(wif_t[H:]).at[:H, H:].set(wib_t[:H])
        w_in = jnp.concatenate([A, Bm], axis=0)          # multiplies concat(seq[s], seq[T-1-s])
        whh = jnp.zeros((2 * H, 2 * H), f32)
        whh = whh.at[:H, :H].set(whf_t).at[H:, H:].set(whb_t)
        bias = jnp.concatenate([bif + bhf, bib + bhb])   # (2H,)
        layer_buf = layer_buf.at[li, :w_in.shape[0], :].set(w_in)
        layer_buf = layer_buf.at[li, 4 * H, :].set(bias)
        layer_buf = layer_buf.at[li, 4 * H + 8:4 * H + 8 + 2 * H, :].set(whh)

    # Head buffer: fc1 fused for concat(seq[T-1], seq[0]) = [f(T-1)|g(T-1)|f(0)|g(0)];
    # fc1 acts on [f(T-1) | g(0)] -> rows 0:H and 3H:4H, middle rows stay zero.
    w1, b1 = params["fc1"]                           # (H, 2H), (H,)
    w2, b2 = params["fc2"]                           # (O, H), (O,)
    head_buf = jnp.zeros((4 * H + 8 + H + 8, H), f32)
    w1_t = w1.T                                      # (2H, H)
    head_buf = head_buf.at[:H, :].set(w1_t[:H])
    head_buf = head_buf.at[3 * H:4 * H, :].set(w1_t[H:])
    head_buf = head_buf.at[4 * H, :].set(b1)
    head_buf = head_buf.at[4 * H + 8:4 * H + 8 + H, :O].set(w2.T)
    head_buf = head_buf.at[4 * H + 8 + H, :O].set(b2)
    return {"layers": layer_buf, "head": head_buf}


def rnn_model_forward(x, layer_buf, head_buf, *, out_dim):
    """x: (B, T, input_size) batch-first, exactly like the PyTorch module."""
    B = x.shape[0]
    # Everything is tiny (<1 MB), so all operands sit in VMEM as whole blocks;
    # no grid => no pipeline / per-step DMA overhead; only 3 input DMAs total.
    vmem = pl.BlockSpec(memory_space=pltpu.MemorySpace.VMEM)
    return pl.pallas_call(
        fused_rnn_mlp_kernel,
        out_shape=jax.ShapeDtypeStruct((B, out_dim), jnp.float32),
        in_specs=[vmem, vmem, vmem],
        out_specs=vmem,
    )(x.astype(jnp.float32), layer_buf, head_buf)


# -----------------------------------------------------------------------------
# Deterministic parameter init (PyTorch-style U(-1/sqrt(H), 1/sqrt(H)))
# -----------------------------------------------------------------------------
def init_params(key, input_size, hidden_size, output_size, num_layers):
    k = 1.0 / math.sqrt(hidden_size)

    def uni(key, shape):
        return jax.random.uniform(key, shape, jnp.float32, minval=-k, maxval=k)

    rnn_layers = []
    for layer in range(num_layers):
        d_in = input_size if layer == 0 else 2 * hidden_size
        dirs = []
        for _ in range(2):  # forward, backward
            key, k1, k2, k3, k4 = jax.random.split(key, 5)
            dirs.append(
                (
                    uni(k1, (hidden_size, d_in)),         # W_ih
                    uni(k2, (hidden_size, hidden_size)),  # W_hh
                    uni(k3, (hidden_size,)),              # b_ih
                    uni(k4, (hidden_size,)),              # b_hh
                )
            )
        rnn_layers.append(tuple(dirs))

    key, k1, k2, k3, k4 = jax.random.split(key, 5)
    fc1 = (uni(k1, (hidden_size, 2 * hidden_size)), uni(k2, (hidden_size,)))
    fc2 = (uni(k3, (output_size, hidden_size)), uni(k4, (output_size,)))
    return {"rnn": rnn_layers, "fc1": fc1, "fc2": fc2}


# -----------------------------------------------------------------------------
# Pure-JAX reference (for correctness check)
# -----------------------------------------------------------------------------
def reference_forward(x, params):
    x_tm = jnp.transpose(x, (1, 0, 2)).astype(jnp.float32)

    def run_dir(x_tm, w_ih, w_hh, b_ih, b_hh, reverse):
        def step(h, xt):
            h_new = jnp.tanh(xt @ w_ih.T + b_ih + h @ w_hh.T + b_hh)
            return h_new, h_new

        h0 = jnp.zeros((x_tm.shape[1], w_hh.shape[0]), jnp.float32)
        xs = x_tm[::-1] if reverse else x_tm
        _, ys = jax.lax.scan(step, h0, xs)
        return ys[::-1] if reverse else ys

    for layer in params["rnn"]:
        outs = [
            run_dir(x_tm, *layer[0], reverse=False),
            run_dir(x_tm, *layer[1], reverse=True),
        ]
        x_tm = jnp.concatenate(outs, axis=-1)

    last = x_tm[-1]
    w1, b1 = params["fc1"]
    w2, b2 = params["fc2"]
    h = jnp.maximum(last @ w1.T + b1, 0.0)
    return h @ w2.T + b2


# -----------------------------------------------------------------------------
if __name__ == "__main__":
    batch, seq_len, input_size, hidden_size, output_size, num_layers = 2, 8, 4, 32, 1, 2

    key = jax.random.PRNGKey(0)
    key, pkey, xkey = jax.random.split(key, 3)
    params = init_params(pkey, input_size, hidden_size, output_size, num_layers)
    x = jax.random.normal(xkey, (batch, seq_len, input_size), jnp.float32)

    # One-time weight fusion & packing (hoisted out of the hot path).
    prepared = prepare_params(params, input_size, hidden_size, output_size)

    fwd = jax.jit(functools.partial(rnn_model_forward, out_dim=output_size))
    out = jax.block_until_ready(fwd(x, prepared["layers"], prepared["head"]))

    ref = jax.block_until_ready(reference_forward(x, params))
    assert out.shape == (batch, output_size), out.shape
    assert jnp.allclose(out, ref, atol=1e-4, rtol=1e-4), (out, ref)

    print("KERNEL_OK")
</pallas_src>

<mosaic_0001>
module attributes {stable_mosaic.version = 11 : i64} {
  func.func @fused_rnn_mlp_kernel(%arg0: memref<2x8x4xf32, #tpu.memory_space<vmem>>, %arg1: memref<2x200x64xf32, #tpu.memory_space<vmem>>, %arg2: memref<176x32xf32, #tpu.memory_space<vmem>>, %arg3: memref<2x1xf32, #tpu.memory_space<vmem>>) attributes {dimension_semantics = [], scalar_prefetch = 0 : i64, scratch_operands = 0 : i64, tpu.core_type = #tpu.core_type<tc>} {
    %c0 = arith.constant 0 : index
    %c0_0 = arith.constant 0 : index
    %c0_1 = arith.constant 0 : index
    %0 = vector.load %arg0[%c0, %c0_0, %c0_1] : memref<2x8x4xf32, #tpu.memory_space<vmem>>, vector<2x8x4xf32>
    %1 = vector.extract_strided_slice %0 {offsets = [0, 0, 0], sizes = [2, 1, 4], strides = [1, 1, 1]} : vector<2x8x4xf32> to vector<2x1x4xf32>
    %2 = vector.shape_cast %1 : vector<2x1x4xf32> to vector<2x4xf32>
    %3 = vector.extract_strided_slice %0 {offsets = [0, 1, 0], sizes = [2, 1, 4], strides = [1, 1, 1]} : vector<2x8x4xf32> to vector<2x1x4xf32>
    %4 = vector.shape_cast %3 : vector<2x1x4xf32> to vector<2x4xf32>
    %5 = vector.extract_strided_slice %0 {offsets = [0, 2, 0], sizes = [2, 1, 4], strides = [1, 1, 1]} : vector<2x8x4xf32> to vector<2x1x4xf32>
    %6 = vector.shape_cast %5 : vector<2x1x4xf32> to vector<2x4xf32>
    %7 = vector.extract_strided_slice %0 {offsets = [0, 3, 0], sizes = [2, 1, 4], strides = [1, 1, 1]} : vector<2x8x4xf32> to vector<2x1x4xf32>
    %8 = vector.shape_cast %7 : vector<2x1x4xf32> to vector<2x4xf32>
    %9 = vector.extract_strided_slice %0 {offsets = [0, 4, 0], sizes = [2, 1, 4], strides = [1, 1, 1]} : vector<2x8x4xf32> to vector<2x1x4xf32>
    %10 = vector.shape_cast %9 : vector<2x1x4xf32> to vector<2x4xf32>
    %11 = vector.extract_strided_slice %0 {offsets = [0, 5, 0], sizes = [2, 1, 4], strides = [1, 1, 1]} : vector<2x8x4xf32> to vector<2x1x4xf32>
    %12 = vector.shape_cast %11 : vector<2x1x4xf32> to vector<2x4xf32>
    %13 = vector.extract_strided_slice %0 {offsets = [0, 6, 0], sizes = [2, 1, 4], strides = [1, 1, 1]} : vector<2x8x4xf32> to vector<2x1x4xf32>
    %14 = vector.shape_cast %13 : vector<2x1x4xf32> to vector<2x4xf32>
    %15 = vector.extract_strided_slice %0 {offsets = [0, 7, 0], sizes = [2, 1, 4], strides = [1, 1, 1]} : vector<2x8x4xf32> to vector<2x1x4xf32>
    %16 = vector.shape_cast %15 : vector<2x1x4xf32> to vector<2x4xf32>
    %c0_2 = arith.constant 0 : index
    %c0_3 = arith.constant 0 : index
    %c0_4 = arith.constant 0 : index
    %17 = vector.load %arg1[%c0_2, %c0_3, %c0_4] : memref<2x200x64xf32, #tpu.memory_space<vmem>>, vector<1x8x64xf32>
    %18 = vector.shape_cast %17 : vector<1x8x64xf32> to vector<8x64xf32>
    %c0_5 = arith.constant 0 : index
    %c128 = arith.constant 128 : index
    %c0_6 = arith.constant 0 : index
    %19 = vector.load %arg1[%c0_5, %c128, %c0_6] : memref<2x200x64xf32, #tpu.memory_space<vmem>>, vector<1x1x64xf32>
    %20 = vector.shape_cast %19 : vector<1x1x64xf32> to vector<1x64xf32>
    %c0_7 = arith.constant 0 : index
    %c136 = arith.constant 136 : index
    %c0_8 = arith.constant 0 : index
    %21 = vector.load %arg1[%c0_7, %c136, %c0_8] : memref<2x200x64xf32, #tpu.memory_space<vmem>>, vector<1x64x64xf32>
    %22 = vector.shape_cast %21 : vector<1x64x64xf32> to vector<64x64xf32>
    %23 = tpu.concatenate %2, %16 in 1 : vector<2x4xf32>, vector<2x4xf32> -> vector<2x8xf32>
    %24 = tpu.concatenate %4, %14 in 1 : vector<2x4xf32>, vector<2x4xf32> -> vector<2x8xf32>
    %25 = tpu.concatenate %6, %12 in 1 : vector<2x4xf32>, vector<2x4xf32> -> vector<2x8xf32>
    %26 = tpu.concatenate %8, %10 in 1 : vector<2x4xf32>, vector<2x4xf32> -> vector<2x8xf32>
    %27 = tpu.concatenate %10, %8 in 1 : vector<2x4xf32>, vector<2x4xf32> -> vector<2x8xf32>
    %28 = tpu.concatenate %12, %6 in 1 : vector<2x4xf32>, vector<2x4xf32> -> vector<2x8xf32>
    %29 = tpu.concatenate %14, %4 in 1 : vector<2x4xf32>, vector<2x4xf32> -> vector<2x8xf32>
    %30 = tpu.concatenate %16, %2 in 1 : vector<2x4xf32>, vector<2x4xf32> -> vector<2x8xf32>
    %31 = tpu.concatenate %23, %24, %25, %26, %27, %28, %29, %30 in 0 : vector<2x8xf32>, vector<2x8xf32>, vector<2x8xf32>, vector<2x8xf32>, vector<2x8xf32>, vector<2x8xf32>, vector<2x8xf32>, vector<2x8xf32> -> vector<16x8xf32>
    %cst = arith.constant dense<0.000000e+00> : vector<16x64xf32>
    %32 = tpu.matmul %31, %18, %cst {dimension_numbers = #tpu.dot_dimension_numbers<[1], [0], [0], [1], [0, 0, 1, 1], [], []>} : vector<16x8xf32>, vector<8x64xf32>, vector<16x64xf32> -> vector<16x64xf32>
    %33 = vector.broadcast %20 : vector<1x64xf32> to vector<16x64xf32>
    %34 = arith.addf %32, %33 : vector<16x64xf32>
    %35 = vector.extract_strided_slice %34 {offsets = [0, 0], sizes = [2, 64], strides = [1, 1]} : vector<16x64xf32> to vector<2x64xf32>
    %36 = vector.extract_strided_slice %34 {offsets = [2, 0], sizes = [2, 64], strides = [1, 1]} : vector<16x64xf32> to vector<2x64xf32>
    %37 = vector.extract_strided_slice %34 {offsets = [4, 0], sizes = [2, 64], strides = [1, 1]} : vector<16x64xf32> to vector<2x64xf32>
    %38 = vector.extract_strided_slice %34 {offsets = [6, 0], sizes = [2, 64], strides = [1, 1]} : vector<16x64xf32> to vector<2x64xf32>
    %39 = vector.extract_strided_slice %34 {offsets = [8, 0], sizes = [2, 64], strides = [1, 1]} : vector<16x64xf32> to vector<2x64xf32>
    %40 = vector.extract_strided_slice %34 {offsets = [10, 0], sizes = [2, 64], strides = [1, 1]} : vector<16x64xf32> to vector<2x64xf32>
    %41 = vector.extract_strided_slice %34 {offsets = [12, 0], sizes = [2, 64], strides = [1, 1]} : vector<16x64xf32> to vector<2x64xf32>
    %42 = vector.extract_strided_slice %34 {offsets = [14, 0], sizes = [2, 64], strides = [1, 1]} : vector<16x64xf32> to vector<2x64xf32>
    %43 = math.tanh %35 : vector<2x64xf32>
    %cst_9 = arith.constant dense<0.000000e+00> : vector<2x64xf32>
    %44 = tpu.matmul %43, %22, %cst_9 {dimension_numbers = #tpu.dot_dimension_numbers<[1], [0], [0], [1], [0, 0, 1, 1], [], []>} : vector<2x64xf32>, vector<64x64xf32>, vector<2x64xf32> -> vector<2x64xf32>
    %45 = arith.addf %36, %44 : vector<2x64xf32>
    %46 = math.tanh %45 : vector<2x64xf32>
    %cst_10 = arith.constant dense<0.000000e+00> : vector<2x64xf32>
    %47 = tpu.matmul %46, %22, %cst_10 {dimension_numbers = #tpu.dot_dimension_numbers<[1], [0], [0], [1], [0, 0, 1, 1], [], []>} : vector<2x64xf32>, vector<64x64xf32>, vector<2x64xf32> -> vector<2x64xf32>
    %48 = arith.addf %37, %47 : vector<2x64xf32>
    %49 = math.tanh %48 : vector<2x64xf32>
    %cst_11 = arith.constant dense<0.000000e+00> : vector<2x64xf32>
    %50 = tpu.matmul %49, %22, %cst_11 {dimension_numbers = #tpu.dot_dimension_numbers<[1], [0], [0], [1], [0, 0, 1, 1], [], []>} : vector<2x64xf32>, vector<64x64xf32>, vector<2x64xf32> -> vector<2x64xf32>
    %51 = arith.addf %38, %50 : vector<2x64xf32>
    %52 = math.tanh %51 : vector<2x64xf32>
    %cst_12 = arith.constant dense<0.000000e+00> : vector<2x64xf32>
    %53 = tpu.matmul %52, %22, %cst_12 {dimension_numbers = #tpu.dot_dimension_numbers<[1], [0], [0], [1], [0, 0, 1, 1], [], []>} : vector<2x64xf32>, vector<64x64xf32>, vector<2x64xf32> -> vector<2x64xf32>
    %54 = arith.addf %39, %53 : vector<2x64xf32>
    %55 = math.tanh %54 : vector<2x64xf32>
    %cst_13 = arith.constant dense<0.000000e+00> : vector<2x64xf32>
    %56 = tpu.matmul %55, %22, %cst_13 {dimension_numbers = #tpu.dot_dimension_numbers<[1], [0], [0], [1], [0, 0, 1, 1], [], []>} : vector<2x64xf32>, vector<64x64xf32>, vector<2x64xf32> -> vector<2x64xf32>
    %57 = arith.addf %40, %56 : vector<2x64xf32>
    %58 = math.tanh %57 : vector<2x64xf32>
    %cst_14 = arith.constant dense<0.000000e+00> : vector<2x64xf32>
    %59 = tpu.matmul %58, %22, %cst_14 {dimension_numbers = #tpu.dot_dimension_numbers<[1], [0], [0], [1], [0, 0, 1, 1], [], []>} : vector<2x64xf32>, vector<64x64xf32>, vector<2x64xf32> -> vector<2x64xf32>
    %60 = arith.addf %41, %59 : vector<2x64xf32>
    %61 = math.tanh %60 : vector<2x64xf32>
    %cst_15 = arith.constant dense<0.000000e+00> : vector<2x64xf32>
    %62 = tpu.matmul %61, %22, %cst_15 {dimension_numbers = #tpu.dot_dimension_numbers<[1], [0], [0], [1], [0, 0, 1, 1], [], []>} : vector<2x64xf32>, vector<64x64xf32>, vector<2x64xf32> -> vector<2x64xf32>
    %63 = arith.addf %42, %62 : vector<2x64xf32>
    %64 = math.tanh %63 : vector<2x64xf32>
    %c1 = arith.constant 1 : index
    %c0_16 = arith.constant 0 : index
    %c0_17 = arith.constant 0 : index
    %65 = vector.load %arg1[%c1, %c0_16, %c0_17] : memref<2x200x64xf32, #tpu.memory_space<vmem>>, vector<1x128x64xf32>
    %66 = vector.shape_cast %65 : vector<1x128x64xf32> to vector<128x64xf32>
    %c1_18 = arith.constant 1 : index
    %c128_19 = arith.constant 128 : index
    %c0_20 = arith.constant 0 : index
    %67 = vector.load %arg1[%c1_18, %c128_19, %c0_20] : memref<2x200x64xf32, #tpu.memory_space<vmem>>, vector<1x1x64xf32>
    %68 = vector.shape_cast %67 : vector<1x1x64xf32> to vector<1x64xf32>
    %c1_21 = arith.constant 1 : index
    %c136_22 = arith.constant 136 : index
    %c0_23 = arith.constant 0 : index
    %69 = vector.load %arg1[%c1_21, %c136_22, %c0_23] : memref<2x200x64xf32, #tpu.memory_space<vmem>>, vector<1x64x64xf32>
    %70 = vector.shape_cast %69 : vector<1x64x64xf32> to vector<64x64xf32>
    %71 = tpu.concatenate %43, %64 in 1 : vector<2x64xf32>, vector<2x64xf32> -> vector<2x128xf32>
    %72 = tpu.concatenate %46, %61 in 1 : vector<2x64xf32>, vector<2x64xf32> -> vector<2x128xf32>
    %73 = tpu.concatenate %49, %58 in 1 : vector<2x64xf32>, vector<2x64xf32> -> vector<2x128xf32>
    %74 = tpu.concatenate %52, %55 in 1 : vector<2x64xf32>, vector<2x64xf32> -> vector<2x128xf32>
    %75 = tpu.concatenate %55, %52 in 1 : vector<2x64xf32>, vector<2x64xf32> -> vector<2x128xf32>
    %76 = tpu.concatenate %58, %49 in 1 : vector<2x64xf32>, vector<2x64xf32> -> vector<2x128xf32>
    %77 = tpu.concatenate %61, %46 in 1 : vector<2x64xf32>, vector<2x64xf32> -> vector<2x128xf32>
    %78 = tpu.concatenate %64, %43 in 1 : vector<2x64xf32>, vector<2x64xf32> -> vector<2x128xf32>
    %79 = tpu.concatenate %71, %72, %73, %74, %75, %76, %77, %78 in 0 : vector<2x128xf32>, vector<2x128xf32>, vector<2x128xf32>, vector<2x128xf32>, vector<2x128xf32>, vector<2x128xf32>, vector<2x128xf32>, vector<2x128xf32> -> vector<16x128xf32>
    %cst_24 = arith.constant dense<0.000000e+00> : vector<16x64xf32>
    %80 = tpu.matmul %79, %66, %cst_24 {dimension_numbers = #tpu.dot_dimension_numbers<[1], [0], [0], [1], [0, 0, 1, 1], [], []>} : vector<16x128xf32>, vector<128x64xf32>, vector<16x64xf32> -> vector<16x64xf32>
    %81 = vector.broadcast %68 : vector<1x64xf32> to vector<16x64xf32>
    %82 = arith.addf %80, %81 : vector<16x64xf32>
    %83 = vector.extract_strided_slice %82 {offsets = [0, 0], sizes = [2, 64], strides = [1, 1]} : vector<16x64xf32> to vector<2x64xf32>
    %84 = vector.extract_strided_slice %82 {offsets = [2, 0], sizes = [2, 64], strides = [1, 1]} : vector<16x64xf32> to vector<2x64xf32>
    %85 = vector.extract_strided_slice %82 {offsets = [4, 0], sizes = [2, 64], strides = [1, 1]} : vector<16x64xf32> to vector<2x64xf32>
    %86 = vector.extract_strided_slice %82 {offsets = [6, 0], sizes = [2, 64], strides = [1, 1]} : vector<16x64xf32> to vector<2x64xf32>
    %87 = vector.extract_strided_slice %82 {offsets = [8, 0], sizes = [2, 64], strides = [1, 1]} : vector<16x64xf32> to vector<2x64xf32>
    %88 = vector.extract_strided_slice %82 {offsets = [10, 0], sizes = [2, 64], strides = [1, 1]} : vector<16x64xf32> to vector<2x64xf32>
    %89 = vector.extract_strided_slice %82 {offsets = [12, 0], sizes = [2, 64], strides = [1, 1]} : vector<16x64xf32> to vector<2x64xf32>
    %90 = vector.extract_strided_slice %82 {offsets = [14, 0], sizes = [2, 64], strides = [1, 1]} : vector<16x64xf32> to vector<2x64xf32>
    %91 = math.tanh %83 : vector<2x64xf32>
    %cst_25 = arith.constant dense<0.000000e+00> : vector<2x64xf32>
    %92 = tpu.matmul %91, %70, %cst_25 {dimension_numbers = #tpu.dot_dimension_numbers<[1], [0], [0], [1], [0, 0, 1, 1], [], []>} : vector<2x64xf32>, vector<64x64xf32>, vector<2x64xf32> -> vector<2x64xf32>
    %93 = arith.addf %84, %92 : vector<2x64xf32>
    %94 = math.tanh %93 : vector<2x64xf32>
    %cst_26 = arith.constant dense<0.000000e+00> : vector<2x64xf32>
    %95 = tpu.matmul %94, %70, %cst_26 {dimension_numbers = #tpu.dot_dimension_numbers<[1], [0], [0], [1], [0, 0, 1, 1], [], []>} : vector<2x64xf32>, vector<64x64xf32>, vector<2x64xf32> -> vector<2x64xf32>
    %96 = arith.addf %85, %95 : vector<2x64xf32>
    %97 = math.tanh %96 : vector<2x64xf32>
    %cst_27 = arith.constant dense<0.000000e+00> : vector<2x64xf32>
    %98 = tpu.matmul %97, %70, %cst_27 {dimension_numbers = #tpu.dot_dimension_numbers<[1], [0], [0], [1], [0, 0, 1, 1], [], []>} : vector<2x64xf32>, vector<64x64xf32>, vector<2x64xf32> -> vector<2x64xf32>
    %99 = arith.addf %86, %98 : vector<2x64xf32>
    %100 = math.tanh %99 : vector<2x64xf32>
    %cst_28 = arith.constant dense<0.000000e+00> : vector<2x64xf32>
    %101 = tpu.matmul %100, %70, %cst_28 {dimension_numbers = #tpu.dot_dimension_numbers<[1], [0], [0], [1], [0, 0, 1, 1], [], []>} : vector<2x64xf32>, vector<64x64xf32>, vector<2x64xf32> -> vector<2x64xf32>
    %102 = arith.addf %87, %101 : vector<2x64xf32>
    %103 = math.tanh %102 : vector<2x64xf32>
    %cst_29 = arith.constant dense<0.000000e+00> : vector<2x64xf32>
    %104 = tpu.matmul %103, %70, %cst_29 {dimension_numbers = #tpu.dot_dimension_numbers<[1], [0], [0], [1], [0, 0, 1, 1], [], []>} : vector<2x64xf32>, vector<64x64xf32>, vector<2x64xf32> -> vector<2x64xf32>
    %105 = arith.addf %88, %104 : vector<2x64xf32>
    %106 = math.tanh %105 : vector<2x64xf32>
    %cst_30 = arith.constant dense<0.000000e+00> : vector<2x64xf32>
    %107 = tpu.matmul %106, %70, %cst_30 {dimension_numbers = #tpu.dot_dimension_numbers<[1], [0], [0], [1], [0, 0, 1, 1], [], []>} : vector<2x64xf32>, vector<64x64xf32>, vector<2x64xf32> -> vector<2x64xf32>
    %108 = arith.addf %89, %107 : vector<2x64xf32>
    %109 = math.tanh %108 : vector<2x64xf32>
    %cst_31 = arith.constant dense<0.000000e+00> : vector<2x64xf32>
    %110 = tpu.matmul %109, %70, %cst_31 {dimension_numbers = #tpu.dot_dimension_numbers<[1], [0], [0], [1], [0, 0, 1, 1], [], []>} : vector<2x64xf32>, vector<64x64xf32>, vector<2x64xf32> -> vector<2x64xf32>
    %111 = arith.addf %90, %110 : vector<2x64xf32>
    %112 = math.tanh %111 : vector<2x64xf32>
    %c0_32 = arith.constant 0 : index
    %c0_33 = arith.constant 0 : index
    %113 = vector.load %arg2[%c0_32, %c0_33] : memref<176x32xf32, #tpu.memory_space<vmem>>, vector<128x32xf32>
    %c128_34 = arith.constant 128 : index
    %c0_35 = arith.constant 0 : index
    %114 = vector.load %arg2[%c128_34, %c0_35] : memref<176x32xf32, #tpu.memory_space<vmem>>, vector<1x32xf32>
    %c136_36 = arith.constant 136 : index
    %c0_37 = arith.constant 0 : index
    %115 = vector.load %arg2[%c136_36, %c0_37] : memref<176x32xf32, #tpu.memory_space<vmem>>, vector<32x32xf32>
    %c168 = arith.constant 168 : index
    %c0_38 = arith.constant 0 : index
    %116 = vector.load %arg2[%c168, %c0_38] : memref<176x32xf32, #tpu.memory_space<vmem>>, vector<1x32xf32>
    %117 = tpu.concatenate %112, %91 in 1 : vector<2x64xf32>, vector<2x64xf32> -> vector<2x128xf32>
    %cst_39 = arith.constant dense<0.000000e+00> : vector<2x32xf32>
    %118 = tpu.matmul %117, %113, %cst_39 {dimension_numbers = #tpu.dot_dimension_numbers<[1], [0], [0], [1], [0, 0, 1, 1], [], []>} : vector<2x128xf32>, vector<128x32xf32>, vector<2x32xf32> -> vector<2x32xf32>
    %119 = vector.broadcast %114 : vector<1x32xf32> to vector<2x32xf32>
    %120 = arith.addf %118, %119 : vector<2x32xf32>
    %cst_40 = arith.constant 0.000000e+00 : f32
    %121 = vector.broadcast %cst_40 : f32 to vector<2x32xf32>
    %122 = arith.maximumf %120, %121 : vector<2x32xf32>
    %cst_41 = arith.constant dense<0.000000e+00> : vector<2x32xf32>
    %123 = tpu.matmul %122, %115, %cst_41 {dimension_numbers = #tpu.dot_dimension_numbers<[1], [0], [0], [1], [0, 0, 1, 1], [], []>} : vector<2x32xf32>, vector<32x32xf32>, vector<2x32xf32> -> vector<2x32xf32>
    %124 = vector.broadcast %116 : vector<1x32xf32> to vector<2x32xf32>
    %125 = arith.addf %123, %124 : vector<2x32xf32>
    %126 = vector.extract_strided_slice %125 {offsets = [0, 0], sizes = [2, 1], strides = [1, 1]} : vector<2x32xf32> to vector<2x1xf32>
    %c0_42 = arith.constant 0 : index
    %c0_43 = arith.constant 0 : index
    %127 = vector.load %arg3[%c0_42, %c0_43] : memref<2x1xf32, #tpu.memory_space<vmem>>, vector<2x1xf32>
    tpu.vector_store %arg3[%c0_42, %c0_43], %126 {strides = array<i32>} : memref<2x1xf32, #tpu.memory_space<vmem>>, vector<2x1xf32>,
    return
  }
}

</mosaic_0001>

<llo_original>
// kernel: rnn_model_forward.1
$region0: #{rnn_model_forward.1}
  #allocation0 [shape = 'u32[]', space=smem, size = 0x4, offset = 0x4, fixed_abs, tag = 'smem constant byte address 0x4 - core index']
  #allocation1 [shape = 'u32[144,128]{1,0:T(1,128)}', space=vmem, size = 0x12000, scoped, tag = 'internal scratch']
  %s0 = inlined_call_operand.vmem [shape: f32[2,8,4], index: 0, kind: input, shape index: {}]
  %s1 = inlined_call_operand.vmem [shape: f32[2,200,64], index: 1, kind: input, shape index: {}]
  %s2 = inlined_call_operand.vmem [shape: f32[176,32], index: 2, kind: input, shape index: {}]
  %s3 = inlined_call_operand.vmem [shape: f32[2,1], index: 3, kind: output, shape index: {}]
  %s4 = sld [smem:[#allocation0]]
  $region22: #{rnn_model_forward.1} parent=0
    _
  %s6 = ssub.s32 1, %s4
  %s7 = scalar_select 0, %s6, %s4
  // Predicated region
  $region2: #{rnn_model_forward.1} parent=0 // pred_check
    _
  $region3: #{rnn_model_forward.1} parent=0 // pred_check_branch
    %9 = sbr.rel (0) target = $region5
  $region4: #{rnn_model_forward.1} parent=0 // pred_region
    _
  $region5: #{rnn_model_forward.1} parent=0 // pred_fallthru
    _
  // Predicated region
  $region6: #{rnn_model_forward.1} parent=0 // pred_check
    _
  $region7: #{rnn_model_forward.1} parent=0 // pred_check_branch
    %11 = sbr.rel (0) target = $region9
  $region8: #{rnn_model_forward.1} parent=0 // pred_region
    _
  $region9: #{rnn_model_forward.1} parent=0 // pred_fallthru
    _
  // Predicated region
  $region10: #{rnn_model_forward.1} parent=0 // pred_check
    _
  $region11: #{rnn_model_forward.1} parent=0 // pred_check_branch
    %13 = sbr.rel (0) target = $region13
  $region12: #{rnn_model_forward.1} parent=0 // pred_region
    _
  $region13: #{rnn_model_forward.1} parent=0 // pred_fallthru
    _
  %v14 = vld [vmem:[%s0] sm:$0xff]
  %v15 = vld [vmem:[%s0 + $0x8] sm:$0xff]
  %v16 = vld [vmem:[%s1] sm:$0xff]
  %v17 = vld [vmem:[%s1 + $0x80] sm:$0x1]
  %v18 = vld [vmem:[%s1 + $0x88] sm:$0xff]
  %v19 = vld [vmem:[%s1 + $0x90] sm:$0xff]
  %v20 = vld [vmem:[%s1 + $0x98] sm:$0xff]
  %v21 = vld [vmem:[%s1 + $0xa0] sm:$0xff]
  %v22 = vld [vmem:[%s1 + $0xa8] sm:$0xff]
  %v23 = vld [vmem:[%s1 + $0xb0] sm:$0xff]
  %v24 = vld [vmem:[%s1 + $0xb8] sm:$0xff]
  %v25 = vld [vmem:[%s1 + $0xc0] sm:$0xff]
  %v28 = vrot.slane %v15, 7
  %vm29 = vcmask 1041409
  %v30 = vsel %vm29, %v28, %v14
  %v32 = vrot.slane %v14, 7
  %v33 = vrot.slane %v15, 6
  %v34 = vsel %vm29, %v33, %v32
  %35 = vrot.lane.b32.xlu0 %v34, 4
  %v36 = vpop.permute.xlu0 %35
  %vm38 = vcmask 31744
  %v39 = vsel %vm38, %v30, %v36
  %vm40 = vcmask 1042434
  %v41 = vsel %vm40, %v28, %v14
  %v43 = vrot.slane %v14, 5
  %v44 = vrot.slane %v15, 4
  %v45 = vsel %vm40, %v44, %v43
  %46 = vrot.lane.b32.xlu0 %v45, 4
  %v47 = vpop.permute.xlu0 %46
  %v49 = vsel %vm38, %v41, %v47
  %vm50 = vcmask 1043459
  %v51 = vsel %vm50, %v28, %v14
  %v53 = vrot.slane %v14, 3
  %v54 = vrot.slane %v15, 2
  %v55 = vsel %vm50, %v54, %v53
  %56 = vrot.lane.b32.xlu0 %v55, 4
  %v57 = vpop.permute.xlu0 %56
  %v59 = vsel %vm38, %v51, %v57
  %vm60 = vcmask 1044484
  %v61 = vsel %vm60, %v28, %v14
  %v63 = vrot.slane %v14, 1
  %v64 = vsel %vm60, %v15, %v63
  %65 = vrot.lane.b32.xlu0 %v64, 4
  %v66 = vpop.permute.xlu0 %65
  %v68 = vsel %vm38, %v61, %v66
  %vm69 = vcmask 1045509
  %v70 = vsel %vm69, %v28, %v14
  %v72 = vsel %vm69, %v33, %v32
  %73 = vrot.lane.b32.xlu0 %v72, 4
  %v74 = vpop.permute.xlu0 %73
  %v76 = vsel %vm38, %v70, %v74
  %vm77 = vcmask 1046534
  %v78 = vsel %vm77, %v28, %v14
  %v80 = vsel %vm77, %v44, %v43
  %81 = vrot.lane.b32.xlu0 %v80, 4
  %v82 = vpop.permute.xlu0 %81
  %v84 = vsel %vm38, %v78, %v82
  %vm85 = vcmask 1047559
  %v86 = vsel %vm85, %v28, %v14
  %v88 = vsel %vm85, %v54, %v53
  %89 = vrot.lane.b32.xlu0 %v88, 4
  %v90 = vpop.permute.xlu0 %89
  %v92 = vsel %vm38, %v86, %v90
  %95 = vrot.lane.b32.xlu0 %v63, 4
  %v96 = vpop.permute.xlu0 %95
  %97 = vrot.lane.b32.xlu0 %v15, 4
  %v98 = vpop.permute.xlu0 %97
  %v101 = vsel %vm38, %v14, %v96
  %v102 = vsel %vm38, %v28, %v98
  %v104 = vrot.slane %v49, 7
  %v107 = vrot.slane %v59, 6
  %v110 = vrot.slane %v68, 5
  %v113 = vrot.slane %v76, 4
  %v116 = vrot.slane %v84, 3
  %v119 = vrot.slane %v92, 2
  %vm123 = vcmask 1046528
  %v124 = vrot.slane %v101, 1
  %v125 = vrot.slane %v102, 1
  %v126 = vsel %vm123, %v124, %v125
  %vm128 = vcmask 1041408
  %v129 = vsel %vm128, %v39, %v104
  %vm130 = vcmask 1043456
  %v131 = vsel %vm130, %v129, %v107
  %vm132 = vcmask 1045504
  %v133 = vsel %vm132, %v131, %v110
  %v134 = vsel %vm128, %v113, %v116
  %v135 = vsel %vm130, %v134, %v119
  %v136 = vsel %vm132, %v135, %v126
  %v137 = vlaneseq
  %v138 = vshrl.u32 %v137, 7
  %v139 = vsub.s32 0, %v138
  %v140 = vrot.slane %v17, %v139
  %vm141 = vcmask 64512
  %v143 = vsel %vm141, %v133, 0
  %v146 = vsel %vm141, %v136, 0
  %148 = vmatprep.subr.mxu0 0.0
  %149 = vmatpush1.msra.mxu0 %v16
  %150 = vmatprep.subr.mxu0 0.0
  %151 = vmatpush1.msra.mxu0 0.0
  %152 = vmatprep.subr.mxu0 0.0
  %153 = vmatpush1.msra.mxu0 0.0
  %154 = vmatprep.subr.mxu0 0.0
  %155 = vmatpush1.msra.mxu0 0.0
  %156 = vmatprep.subr.mxu0 0.0
  %157 = vmatpush1.msra.mxu0 0.0
  %158 = vmatprep.subr.mxu0 0.0
  %159 = vmatpush1.msra.mxu0 0.0
  %160 = vmatprep.subr.mxu0 0.0
  %161 = vmatpush1.msra.mxu0 0.0
  %162 = vmatprep.subr.mxu0 0.0
  %163 = vmatpush1.msra.mxu0 0.0
  %164 = vmatprep.subr.mxu0 0.0
  %165 = vmatpush1.msra.mxu0 0.0
  %166 = vmatprep.subr.mxu0 0.0
  %167 = vmatpush1.msra.mxu0 0.0
  %168 = vmatprep.subr.mxu0 0.0
  %169 = vmatpush1.msra.mxu0 0.0
  %170 = vmatprep.subr.mxu0 0.0
  %171 = vmatpush1.msra.mxu0 0.0
  %172 = vmatprep.subr.mxu0 0.0
  %173 = vmatpush1.msra.mxu0 0.0
  %174 = vmatprep.subr.mxu0 0.0
  %175 = vmatpush1.msra.mxu0 0.0
  %176 = vmatprep.subr.mxu0 0.0
  %177 = vmatpush1.msra.mxu0 0.0
  %178 = vmatprep.subr.mxu0 0.0
  %179 = vmatpush1.msra.mxu0 0.0
  %180 = vmatprep.subr.mxu0 0.0
  %181 = vmatpush1.msra.mxu0 0.0
  %182 = vmatprep.subr.mxu0 0.0
  %183 = vmatpush1.msra.mxu0 0.0
  %184 = vmatprep.subr.mxu0 0.0
  %185 = vmatpush1.msra.mxu0 0.0
  %186 = vmatprep.subr.mxu0 0.0
  %187 = vmatpush1.msra.mxu0 0.0
  %188 = vmatprep.subr.mxu0 0.0
  %189 = vmatpush1.msra.mxu0 0.0
  %190 = vmatprep.subr.mxu0 0.0
  %191 = vmatpush1.msra.mxu0 0.0
  %192 = vmatprep.subr.mxu0 0.0
  %193 = vmatpush1.msra.mxu0 0.0
  %194 = vmatprep.subr.mxu0 0.0
  %195 = vmatpush1.msra.mxu0 0.0
  %196 = vmatprep.subr.mxu0 0.0
  %197 = vmatpush1.msra.mxu0 0.0
  %198 = vmatprep.subr.mxu0 0.0
  %199 = vmatpush1.msra.mxu0 0.0
  %200 = vmatprep.subr.mxu0 0.0
  %201 = vmatpush1.msra.mxu0 0.0
  %202 = vmatprep.subr.mxu0 0.0
  %203 = vmatpush1.msra.mxu0 0.0
  %204 = vmatprep.subr.mxu0 0.0
  %205 = vmatpush1.msra.mxu0 0.0
  %206 = vmatprep.subr.mxu0 0.0
  %207 = vmatpush1.msra.mxu0 0.0
  %208 = vmatprep.subr.mxu0 0.0
  %209 = vmatpush1.msra.mxu0 0.0
  %210 = vmatprep.subr.mxu0 0.0
  %211 = vmatpush1.msra.mxu0 0.0
  %212 = vmatprep.mubr.f32.mxu0 0.0
  %213 = vmatmul.mubr.f32.gmra.mrb[0].mxu0 %v143
  %v214 = vpop.f32.mrb[0].mxu0
  %v215 = vadd.f32 %v140, %v214
  %v216 = vpop.f32.mrb[0].mxu0
  %217 = vmatprep.mubr.f32.mxu0 0.0
  %218 = vmatmul.mubr.f32.gmra.mrb[0].mxu0 %v146
  %v219 = vpop.f32.mrb[0].mxu0
  %v220 = vadd.f32 %v140, %v219
  %v221 = vpop.f32.mrb[0].mxu0
  %222 = vdwg.mxu0
  %v223 = vtanh.pop %v215
  %vm224 = vcmask 523264
  %v226 = vsel %vm224, %v223, 0
  %228 = vmatprep.subr.mxu0 0.0
  %229 = vmatpush1.msra.mxu0 %v18
  %230 = vmatprep.subr.mxu0 0.0
  %231 = vmatpush1.msra.mxu0 %v19
  %232 = vmatprep.subr.mxu0 0.0
  %233 = vmatpush1.msra.mxu0 %v20
  %234 = vmatprep.subr.mxu0 0.0
  %235 = vmatpush1.msra.mxu0 %v21
  %236 = vmatprep.subr.mxu0 0.0
  %237 = vmatpush1.msra.mxu0 %v22
  %238 = vmatprep.subr.mxu0 0.0
  %239 = vmatpush1.msra.mxu0 %v23
  %240 = vmatprep.subr.mxu0 0.0
  %241 = vmatpush1.msra.mxu0 %v24
  %242 = vmatprep.subr.mxu0 0.0
  %243 = vmatpush1.msra.mxu0 %v25
  %244 = vmatprep.subr.mxu0 0.0
  %245 = vmatpush1.msra.mxu0 0.0
  %246 = vmatprep.subr.mxu0 0.0
  %247 = vmatpush1.msra.mxu0 0.0
  %248 = vmatprep.subr.mxu0 0.0
  %249 = vmatpush1.msra.mxu0 0.0
  %250 = vmatprep.subr.mxu0 0.0
  %251 = vmatpush1.msra.mxu0 0.0
  %252 = vmatprep.subr.mxu0 0.0
  %253 = vmatpush1.msra.mxu0 0.0
  %254 = vmatprep.subr.mxu0 0.0
  %255 = vmatpush1.msra.mxu0 0.0
  %256 = vmatprep.subr.mxu0 0.0
  %257 = vmatpush1.msra.mxu0 0.0
  %258 = vmatprep.subr.mxu0 0.0
  %259 = vmatpush1.msra.mxu0 0.0
  %260 = vmatprep.subr.mxu0 0.0
  %261 = vmatpush1.msra.mxu0 0.0
  %262 = vmatprep.subr.mxu0 0.0
  %263 = vmatpush1.msra.mxu0 0.0
  %264 = vmatprep.subr.mxu0 0.0
  %265 = vmatpush1.msra.mxu0 0.0
  %266 = vmatprep.subr.mxu0 0.0
  %267 = vmatpush1.msra.mxu0 0.0
  %268 = vmatprep.subr.mxu0 0.0
  %269 = vmatpush1.msra.mxu0 0.0
  %270 = vmatprep.subr.mxu0 0.0
  %271 = vmatpush1.msra.mxu0 0.0
  %272 = vmatprep.subr.mxu0 0.0
  %273 = vmatpush1.msra.mxu0 0.0
  %274 = vmatprep.subr.mxu0 0.0
  %275 = vmatpush1.msra.mxu0 0.0
  %276 = vmatprep.subr.mxu0 0.0
  %277 = vmatpush1.msra.mxu0 0.0
  %278 = vmatprep.subr.mxu0 0.0
  %279 = vmatpush1.msra.mxu0 0.0
  %280 = vmatprep.subr.mxu0 0.0
  %281 = vmatpush1.msra.mxu0 0.0
  %282 = vmatprep.subr.mxu0 0.0
  %283 = vmatpush1.msra.mxu0 0.0
  %284 = vmatprep.subr.mxu0 0.0
  %285 = vmatpush1.msra.mxu0 0.0
  %286 = vmatprep.subr.mxu0 0.0
  %287 = vmatpush1.msra.mxu0 0.0
  %288 = vmatprep.subr.mxu0 0.0
  %289 = vmatpush1.msra.mxu0 0.0
  %290 = vmatprep.subr.mxu0 0.0
  %291 = vmatpush1.msra.mxu0 0.0
  %292 = vmatprep.mubr.f32.mxu0 0.0
  %293 = vmatmul.mubr.f32.gmra.mrb[0].mxu0 %v226
  %v294 = vpop.f32.mrb[0].mxu0
  %v295 = vadd.f32 0.0, %v294
  %v296 = vpop.f32.mrb[0].mxu0
  %297 = vdwg.mxu0
  %v299 = vrot.slane %v295, 6
  %v301 = vadd.f32 %v215, %v299
  %v302 = vtanh.pop %v301
  %v304 = vrot.slane %v302, 2
  %v305 = vsel %vm224, %v304, 0
  %307 = vmatprep.subr.mxu0 0.0
  %308 = vmatpush1.msra.mxu0 %v18
  %309 = vmatprep.subr.mxu0 0.0
  %310 = vmatpush1.msra.mxu0 %v19
  %311 = vmatprep.subr.mxu0 0.0
  %312 = vmatpush1.msra.mxu0 %v20
  %313 = vmatprep.subr.mxu0 0.0
  %314 = vmatpush1.msra.mxu0 %v21
  %315 = vmatprep.subr.mxu0 0.0
  %316 = vmatpush1.msra.mxu0 %v22
  %317 = vmatprep.subr.mxu0 0.0
  %318 = vmatpush1.msra.mxu0 %v23
  %319 = vmatprep.subr.mxu0 0.0
  %320 = vmatpush1.msra.mxu0 %v24
  %321 = vmatprep.subr.mxu0 0.0
  %322 = vmatpush1.msra.mxu0 %v25
  %323 = vmatprep.subr.mxu0 0.0
  %324 = vmatpush1.msra.mxu0 0.0
  %325 = vmatprep.subr.mxu0 0.0
  %326 = vmatpush1.msra.mxu0 0.0
  %327 = vmatprep.subr.mxu0 0.0
  %328 = vmatpush1.msra.mxu0 0.0
  %329 = vmatprep.subr.mxu0 0.0
  %330 = vmatpush1.msra.mxu0 0.0
  %331 = vmatprep.subr.mxu0 0.0
  %332 = vmatpush1.msra.mxu0 0.0
  %333 = vmatprep.subr.mxu0 0.0
  %334 = vmatpush1.msra.mxu0 0.0
  %335 = vmatprep.subr.mxu0 0.0
  %336 = vmatpush1.msra.mxu0 0.0
  %337 = vmatprep.subr.mxu0 0.0
  %338 = vmatpush1.msra.mxu0 0.0
  %339 = vmatprep.subr.mxu0 0.0
  %340 = vmatpush1.msra.mxu0 0.0
  %341 = vmatprep.subr.mxu0 0.0
  %342 = vmatpush1.msra.mxu0 0.0
  %343 = vmatprep.subr.mxu0 0.0
  %344 = vmatpush1.msra.mxu0 0.0
  %345 = vmatprep.subr.mxu0 0.0
  %346 = vmatpush1.msra.mxu0 0.0
  %347 = vmatprep.subr.mxu0 0.0
  %348 = vmatpush1.msra.mxu0 0.0
  %349 = vmatprep.subr.mxu0 0.0
  %350 = vmatpush1.msra.mxu0 0.0
  %351 = vmatprep.subr.mxu0 0.0
  %352 = vmatpush1.msra.mxu0 0.0
  %353 = vmatprep.subr.mxu0 0.0
  %354 = vmatpush1.msra.mxu0 0.0
  %355 = vmatprep.subr.mxu0 0.0
  %356 = vmatpush1.msra.mxu0 0.0
  %357 = vmatprep.subr.mxu0 0.0
  %358 = vmatpush1.msra.mxu0 0.0
  %359 = vmatprep.subr.mxu0 0.0
  %360 = vmatpush1.msra.mxu0 0.0
  %361 = vmatprep.subr.mxu0 0.0
  %362 = vmatpush1.msra.mxu0 0.0
  %363 = vmatprep.subr.mxu0 0.0
  %364 = vmatpush1.msra.mxu0 0.0
  %365 = vmatprep.subr.mxu0 0.0
  %366 = vmatpush1.msra.mxu0 0.0
  %367 = vmatprep.subr.mxu0 0.0
  %368 = vmatpush1.msra.mxu0 0.0
  %369 = vmatprep.subr.mxu0 0.0
  %370 = vmatpush1.msra.mxu0 0.0
  %371 = vmatprep.mubr.f32.mxu0 0.0
  %372 = vmatmul.mubr.f32.gmra.mrb[0].mxu0 %v305
  %v373 = vpop.f32.mrb[0].mxu0
  %v374 = vadd.f32 0.0, %v373
  %v375 = vpop.f32.mrb[0].mxu0
  %376 = vdwg.mxu0
  %v378 = vrot.slane %v374, 4
  %v380 = vadd.f32 %v215, %v378
  %v381 = vtanh.pop %v380
  %v383 = vrot.slane %v381, 4
  %v384 = vsel %vm224, %v383, 0
  %386 = vmatprep.subr.mxu0 0.0
  %387 = vmatpush1.msra.mxu0 %v18
  %388 = vmatprep.subr.mxu0 0.0
  %389 = vmatpush1.msra.mxu0 %v19
  %390 = vmatprep.subr.mxu0 0.0
  %391 = vmatpush1.msra.mxu0 %v20
  %392 = vmatprep.subr.mxu0 0.0
  %393 = vmatpush1.msra.mxu0 %v21
  %394 = vmatprep.subr.mxu0 0.0
  %395 = vmatpush1.msra.mxu0 %v22
  %396 = vmatprep.subr.mxu0 0.0
  %397 = vmatpush1.msra.mxu0 %v23
  %398 = vmatprep.subr.mxu0 0.0
  %399 = vmatpush1.msra.mxu0 %v24
  %400 = vmatprep.subr.mxu0 0.0
  %401 = vmatpush1.msra.mxu0 %v25
  %402 = vmatprep.subr.mxu0 0.0
  %403 = vmatpush1.msra.mxu0 0.0
  %404 = vmatprep.subr.mxu0 0.0
  %405 = vmatpush1.msra.mxu0 0.0
  %406 = vmatprep.subr.mxu0 0.0
  %407 = vmatpush1.msra.mxu0 0.0
  %408 = vmatprep.subr.mxu0 0.0
  %409 = vmatpush1.msra.mxu0 0.0
  %410 = vmatprep.subr.mxu0 0.0
  %411 = vmatpush1.msra.mxu0 0.0
  %412 = vmatprep.subr.mxu0 0.0
  %413 = vmatpush1.msra.mxu0 0.0
  %414 = vmatprep.subr.mxu0 0.0
  %415 = vmatpush1.msra.mxu0 0.0
  %416 = vmatprep.subr.mxu0 0.0
  %417 = vmatpush1.msra.mxu0 0.0
  %418 = vmatprep.subr.mxu0 0.0
  %419 = vmatpush1.msra.mxu0 0.0
  %420 = vmatprep.subr.mxu0 0.0
  %421 = vmatpush1.msra.mxu0 0.0
  %422 = vmatprep.subr.mxu0 0.0
  %423 = vmatpush1.msra.mxu0 0.0
  %424 = vmatprep.subr.mxu0 0.0
  %425 = vmatpush1.msra.mxu0 0.0
  %426 = vmatprep.subr.mxu0 0.0
  %427 = vmatpush1.msra.mxu0 0.0
  %428 = vmatprep.subr.mxu0 0.0
  %429 = vmatpush1.msra.mxu0 0.0
  %430 = vmatprep.subr.mxu0 0.0
  %431 = vmatpush1.msra.mxu0 0.0
  %432 = vmatprep.subr.mxu0 0.0
  %433 = vmatpush1.msra.mxu0 0.0
  %434 = vmatprep.subr.mxu0 0.0
  %435 = vmatpush1.msra.mxu0 0.0
  %436 = vmatprep.subr.mxu0 0.0
  %437 = vmatpush1.msra.mxu0 0.0
  %438 = vmatprep.subr.mxu0 0.0
  %439 = vmatpush1.msra.mxu0 0.0
  %440 = vmatprep.subr.mxu0 0.0
  %441 = vmatpush1.msra.mxu0 0.0
  %442 = vmatprep.subr.mxu0 0.0
  %443 = vmatpush1.msra.mxu0 0.0
  %444 = vmatprep.subr.mxu0 0.0
  %445 = vmatpush1.msra.mxu0 0.0
  %446 = vmatprep.subr.mxu0 0.0
  %447 = vmatpush1.msra.mxu0 0.0
  %448 = vmatprep.subr.mxu0 0.0
  %449 = vmatpush1.msra.mxu0 0.0
  %450 = vmatprep.mubr.f32.mxu0 0.0
  %451 = vmatmul.mubr.f32.gmra.mrb[0].mxu0 %v384
  %v452 = vpop.f32.mrb[0].mxu0
  %v453 = vadd.f32 0.0, %v452
  %v454 = vpop.f32.mrb[0].mxu0
  %455 = vdwg.mxu0
  %v457 = vrot.slane %v453, 2
  %v459 = vadd.f32 %v215, %v457
  %v460 = vtanh.pop %v459
  %v462 = vrot.slane %v460, 6
  %v463 = vsel %vm224, %v462, 0
  %465 = vmatprep.subr.mxu0 0.0
  %466 = vmatpush1.msra.mxu0 %v18
  %467 = vmatprep.subr.mxu0 0.0
  %468 = vmatpush1.msra.mxu0 %v19
  %469 = vmatprep.subr.mxu0 0.0
  %470 = vmatpush1.msra.mxu0 %v20
  %471 = vmatprep.subr.mxu0 0.0
  %472 = vmatpush1.msra.mxu0 %v21
  %473 = vmatprep.subr.mxu0 0.0
  %474 = vmatpush1.msra.mxu0 %v22
  %475 = vmatprep.subr.mxu0 0.0
  %476 = vmatpush1.msra.mxu0 %v23
  %477 = vmatprep.subr.mxu0 0.0
  %478 = vmatpush1.msra.mxu0 %v24
  %479 = vmatprep.subr.mxu0 0.0
  %480 = vmatpush1.msra.mxu0 %v25
  %481 = vmatprep.subr.mxu0 0.0
  %482 = vmatpush1.msra.mxu0 0.0
  %483 = vmatprep.subr.mxu0 0.0
  %484 = vmatpush1.msra.mxu0 0.0
  %485 = vmatprep.subr.mxu0 0.0
  %486 = vmatpush1.msra.mxu0 0.0
  %487 = vmatprep.subr.mxu0 0.0
  %488 = vmatpush1.msra.mxu0 0.0
  %489 = vmatprep.subr.mxu0 0.0
  %490 = vmatpush1.msra.mxu0 0.0
  %491 = vmatprep.subr.mxu0 0.0
  %492 = vmatpush1.msra.mxu0 0.0
  %493 = vmatprep.subr.mxu0 0.0
  %494 = vmatpush1.msra.mxu0 0.0
  %495 = vmatprep.subr.mxu0 0.0
  %496 = vmatpush1.msra.mxu0 0.0
  %497 = vmatprep.subr.mxu0 0.0
  %498 = vmatpush1.msra.mxu0 0.0
  %499 = vmatprep.subr.mxu0 0.0
  %500 = vmatpush1.msra.mxu0 0.0
  %501 = vmatprep.subr.mxu0 0.0
  %502 = vmatpush1.msra.mxu0 0.0
  %503 = vmatprep.subr.mxu0 0.0
  %504 = vmatpush1.msra.mxu0 0.0
  %505 = vmatprep.subr.mxu0 0.0
  %506 = vmatpush1.msra.mxu0 0.0
  %507 = vmatprep.subr.mxu0 0.0
  %508 = vmatpush1.msra.mxu0 0.0
  %509 = vmatprep.subr.mxu0 0.0
  %510 = vmatpush1.msra.mxu0 0.0
  %511 = vmatprep.subr.mxu0 0.0
  %512 = vmatpush1.msra.mxu0 0.0
  %513 = vmatprep.subr.mxu0 0.0
  %514 = vmatpush1.msra.mxu0 0.0
  %515 = vmatprep.subr.mxu0 0.0
  %516 = vmatpush1.msra.mxu0 0.0
  %517 = vmatprep.subr.mxu0 0.0
  %518 = vmatpush1.msra.mxu0 0.0
  %519 = vmatprep.subr.mxu0 0.0
  %520 = vmatpush1.msra.mxu0 0.0
  %521 = vmatprep.subr.mxu0 0.0
  %522 = vmatpush1.msra.mxu0 0.0
  %523 = vmatprep.subr.mxu0 0.0
  %524 = vmatpush1.msra.mxu0 0.0
  %525 = vmatprep.subr.mxu0 0.0
  %526 = vmatpush1.msra.mxu0 0.0
  %527 = vmatprep.subr.mxu0 0.0
  %528 = vmatpush1.msra.mxu0 0.0
  %529 = vmatprep.mubr.f32.mxu0 0.0
  %530 = vmatmul.mubr.f32.gmra.mrb[0].mxu0 %v463
  %v531 = vpop.f32.mrb[0].mxu0
  %v532 = vadd.f32 0.0, %v531
  %v533 = vpop.f32.mrb[0].mxu0
  %534 = vdwg.mxu0
  %v535 = vadd.f32 %v220, %v532
  %v536 = vtanh.pop %v535
  %v538 = vsel %vm224, %v536, 0
  %540 = vmatprep.subr.mxu0 0.0
  %541 = vmatpush1.msra.mxu0 %v18
  %542 = vmatprep.subr.mxu0 0.0
  %543 = vmatpush1.msra.mxu0 %v19
  %544 = vmatprep.subr.mxu0 0.0
  %545 = vmatpush1.msra.mxu0 %v20
  %546 = vmatprep.subr.mxu0 0.0
  %547 = vmatpush1.msra.mxu0 %v21
  %548 = vmatprep.subr.mxu0 0.0
  %549 = vmatpush1.msra.mxu0 %v22
  %550 = vmatprep.subr.mxu0 0.0
  %551 = vmatpush1.msra.mxu0 %v23
  %552 = vmatprep.subr.mxu0 0.0
  %553 = vmatpush1.msra.mxu0 %v24
  %554 = vmatprep.subr.mxu0 0.0
  %555 = vmatpush1.msra.mxu0 %v25
  %556 = vmatprep.subr.mxu0 0.0
  %557 = vmatpush1.msra.mxu0 0.0
  %558 = vmatprep.subr.mxu0 0.0
  %559 = vmatpush1.msra.mxu0 0.0
  %560 = vmatprep.subr.mxu0 0.0
  %561 = vmatpush1.msra.mxu0 0.0
  %562 = vmatprep.subr.mxu0 0.0
  %563 = vmatpush1.msra.mxu0 0.0
  %564 = vmatprep.subr.mxu0 0.0
  %565 = vmatpush1.msra.mxu0 0.0
  %566 = vmatprep.subr.mxu0 0.0
  %567 = vmatpush1.msra.mxu0 0.0
  %568 = vmatprep.subr.mxu0 0.0
  %569 = vmatpush1.msra.mxu0 0.0
  %570 = vmatprep.subr.mxu0 0.0
  %571 = vmatpush1.msra.mxu0 0.0
  %572 = vmatprep.subr.mxu0 0.0
  %573 = vmatpush1.msra.mxu0 0.0
  %574 = vmatprep.subr.mxu0 0.0
  %575 = vmatpush1.msra.mxu0 0.0
  %576 = vmatprep.subr.mxu0 0.0
  %577 = vmatpush1.msra.mxu0 0.0
  %578 = vmatprep.subr.mxu0 0.0
  %579 = vmatpush1.msra.mxu0 0.0
  %580 = vmatprep.subr.mxu0 0.0
  %581 = vmatpush1.msra.mxu0 0.0
  %582 = vmatprep.subr.mxu0 0.0
  %583 = vmatpush1.msra.mxu0 0.0
  %584 = vmatprep.subr.mxu0 0.0
  %585 = vmatpush1.msra.mxu0 0.0
  %586 = vmatprep.subr.mxu0 0.0
  %587 = vmatpush1.msra.mxu0 0.0
  %588 = vmatprep.subr.mxu0 0.0
  %589 = vmatpush1.msra.mxu0 0.0
  %590 = vmatprep.subr.mxu0 0.0
  %591 = vmatpush1.msra.mxu0 0.0
  %592 = vmatprep.subr.mxu0 0.0
  %593 = vmatpush1.msra.mxu0 0.0
  %594 = vmatprep.subr.mxu0 0.0
  %595 = vmatpush1.msra.mxu0 0.0
  %596 = vmatprep.subr.mxu0 0.0
  %597 = vmatpush1.msra.mxu0 0.0
  %598 = vmatprep.subr.mxu0 0.0
  %599 = vmatpush1.msra.mxu0 0.0
  %600 = vmatprep.subr.mxu0 0.0
  %601 = vmatpush1.msra.mxu0 0.0
  %602 = vmatprep.subr.mxu0 0.0
  %603 = vmatpush1.msra.mxu0 0.0
  %604 = vmatprep.mubr.f32.mxu0 0.0
  %605 = vmatmul.mubr.f32.gmra.mrb[0].mxu0 %v538
  %v606 = vpop.f32.mrb[0].mxu0
  %v607 = vadd.f32 0.0, %v606
  %v608 = vpop.f32.mrb[0].mxu0
  %609 = vdwg.mxu0
  %v611 = vrot.slane %v607, 6
  %v613 = vadd.f32 %v220, %v611
  %v614 = vtanh.pop %v613
  %v616 = vrot.slane %v614, 2
  %v617 = vsel %vm224, %v616, 0
  %619 = vmatprep.subr.mxu0 0.0
  %620 = vmatpush1.msra.mxu0 %v18
  %621 = vmatprep.subr.mxu0 0.0
  %622 = vmatpush1.msra.mxu0 %v19
  %623 = vmatprep.subr.mxu0 0.0
  %624 = vmatpush1.msra.mxu0 %v20
  %625 = vmatprep.subr.mxu0 0.0
  %626 = vmatpush1.msra.mxu0 %v21
  %627 = vmatprep.subr.mxu0 0.0
  %628 = vmatpush1.msra.mxu0 %v22
  %629 = vmatprep.subr.mxu0 0.0
  %630 = vmatpush1.msra.mxu0 %v23
  %631 = vmatprep.subr.mxu0 0.0
  %632 = vmatpush1.msra.mxu0 %v24
  %633 = vmatprep.subr.mxu0 0.0
  %634 = vmatpush1.msra.mxu0 %v25
  %635 = vmatprep.subr.mxu0 0.0
  %636 = vmatpush1.msra.mxu0 0.0
  %637 = vmatprep.subr.mxu0 0.0
  %638 = vmatpush1.msra.mxu0 0.0
  %639 = vmatprep.subr.mxu0 0.0
  %640 = vmatpush1.msra.mxu0 0.0
  %641 = vmatprep.subr.mxu0 0.0
  %642 = vmatpush1.msra.mxu0 0.0
  %643 = vmatprep.subr.mxu0 0.0
  %644 = vmatpush1.msra.mxu0 0.0
  %645 = vmatprep.subr.mxu0 0.0
  %646 = vmatpush1.msra.mxu0 0.0
  %647 = vmatprep.subr.mxu0 0.0
  %648 = vmatpush1.msra.mxu0 0.0
  %649 = vmatprep.subr.mxu0 0.0
  %650 = vmatpush1.msra.mxu0 0.0
  %651 = vmatprep.subr.mxu0 0.0
  %652 = vmatpush1.msra.mxu0 0.0
  %653 = vmatprep.subr.mxu0 0.0
  %654 = vmatpush1.msra.mxu0 0.0
  %655 = vmatprep.subr.mxu0 0.0
  %656 = vmatpush1.msra.mxu0 0.0
  %657 = vmatprep.subr.mxu0 0.0
  %658 = vmatpush1.msra.mxu0 0.0
  %659 = vmatprep.subr.mxu0 0.0
  %660 = vmatpush1.msra.mxu0 0.0
  %661 = vmatprep.subr.mxu0 0.0
  %662 = vmatpush1.msra.mxu0 0.0
  %663 = vmatprep.subr.mxu0 0.0
  %664 = vmatpush1.msra.mxu0 0.0
  %665 = vmatprep.subr.mxu0 0.0
  %666 = vmatpush1.msra.mxu0 0.0
  %667 = vmatprep.subr.mxu0 0.0
  %668 = vmatpush1.msra.mxu0 0.0
  %669 = vmatprep.subr.mxu0 0.0
  %670 = vmatpush1.msra.mxu0 0.0
  %671 = vmatprep.subr.mxu0 0.0
  %672 = vmatpush1.msra.mxu0 0.0
  %673 = vmatprep.subr.mxu0 0.0
  %674 = vmatpush1.msra.mxu0 0.0
  %675 = vmatprep.subr.mxu0 0.0
  %676 = vmatpush1.msra.mxu0 0.0
  %677 = vmatprep.subr.mxu0 0.0
  %678 = vmatpush1.msra.mxu0 0.0
  %679 = vmatprep.subr.mxu0 0.0
  %680 = vmatpush1.msra.mxu0 0.0
  %681 = vmatprep.subr.mxu0 0.0
  %682 = vmatpush1.msra.mxu0 0.0
  %683 = vmatprep.mubr.f32.mxu0 0.0
  %684 = vmatmul.mubr.f32.gmra.mrb[0].mxu0 %v617
  %v685 = vpop.f32.mrb[0].mxu0
  %v686 = vadd.f32 0.0, %v685
  %v687 = vpop.f32.mrb[0].mxu0
  %688 = vdwg.mxu0
  %v690 = vrot.slane %v686, 4
  %v692 = vadd.f32 %v220, %v690
  %v693 = vtanh.pop %v692
  %v695 = vrot.slane %v693, 4
  %v696 = vsel %vm224, %v695, 0
  %698 = vmatprep.subr.mxu0 0.0
  %699 = vmatpush1.msra.mxu0 %v18
  %700 = vmatprep.subr.mxu0 0.0
  %701 = vmatpush1.msra.mxu0 %v19
  %702 = vmatprep.subr.mxu0 0.0
  %703 = vmatpush1.msra.mxu0 %v20
  %704 = vmatprep.subr.mxu0 0.0
  %705 = vmatpush1.msra.mxu0 %v21
  %706 = vmatprep.subr.mxu0 0.0
  %707 = vmatpush1.msra.mxu0 %v22
  %708 = vmatprep.subr.mxu0 0.0
  %709 = vmatpush1.msra.mxu0 %v23
  %710 = vmatprep.subr.mxu0 0.0
  %711 = vmatpush1.msra.mxu0 %v24
  %712 = vmatprep.subr.mxu0 0.0
  %713 = vmatpush1.msra.mxu0 %v25
  %714 = vmatprep.subr.mxu0 0.0
  %715 = vmatpush1.msra.mxu0 0.0
  %716 = vmatprep.subr.mxu0 0.0
  %717 = vmatpush1.msra.mxu0 0.0
  %718 = vmatprep.subr.mxu0 0.0
  %719 = vmatpush1.msra.mxu0 0.0
  %720 = vmatprep.subr.mxu0 0.0
  %721 = vmatpush1.msra.mxu0 0.0
  %722 = vmatprep.subr.mxu0 0.0
  %723 = vmatpush1.msra.mxu0 0.0
  %724 = vmatprep.subr.mxu0 0.0
  %725 = vmatpush1.msra.mxu0 0.0
  %726 = vmatprep.subr.mxu0 0.0
  %727 = vmatpush1.msra.mxu0 0.0
  %728 = vmatprep.subr.mxu0 0.0
  %729 = vmatpush1.msra.mxu0 0.0
  %730 = vmatprep.subr.mxu0 0.0
  %731 = vmatpush1.msra.mxu0 0.0
  %732 = vmatprep.subr.mxu0 0.0
  %733 = vmatpush1.msra.mxu0 0.0
  %734 = vmatprep.subr.mxu0 0.0
  %735 = vmatpush1.msra.mxu0 0.0
  %736 = vmatprep.subr.mxu0 0.0
  %737 = vmatpush1.msra.mxu0 0.0
  %738 = vmatprep.subr.mxu0 0.0
  %739 = vmatpush1.msra.mxu0 0.0
  %740 = vmatprep.subr.mxu0 0.0
  %741 = vmatpush1.msra.mxu0 0.0
  %742 = vmatprep.subr.mxu0 0.0
  %743 = vmatpush1.msra.mxu0 0.0
  %744 = vmatprep.subr.mxu0 0.0
  %745 = vmatpush1.msra.mxu0 0.0
  %746 = vmatprep.subr.mxu0 0.0
  %747 = vmatpush1.msra.mxu0 0.0
  %748 = vmatprep.subr.mxu0 0.0
  %749 = vmatpush1.msra.mxu0 0.0
  %750 = vmatprep.subr.mxu0 0.0
  %751 = vmatpush1.msra.mxu0 0.0
  %752 = vmatprep.subr.mxu0 0.0
  %753 = vmatpush1.msra.mxu0 0.0
  %754 = vmatprep.subr.mxu0 0.0
  %755 = vmatpush1.msra.mxu0 0.0
  %756 = vmatprep.subr.mxu0 0.0
  %757 = vmatpush1.msra.mxu0 0.0
  %758 = vmatprep.subr.mxu0 0.0
  %759 = vmatpush1.msra.mxu0 0.0
  %760 = vmatprep.subr.mxu0 0.0
  %761 = vmatpush1.msra.mxu0 0.0
  %762 = vmatprep.mubr.f32.mxu0 0.0
  %763 = vmatmul.mubr.f32.gmra.mrb[0].mxu0 %v696
  %v764 = vpop.f32.mrb[0].mxu0
  %v765 = vadd.f32 0.0, %v764
  %v766 = vpop.f32.mrb[0].mxu0
  %767 = vdwg.mxu0
  %v769 = vrot.slane %v765, 2
  %v771 = vadd.f32 %v220, %v769
  %v772 = vtanh.pop %v771
  %s773 = scalar_lea.vmem %s1, 200
  %v774 = vld [vmem:[%s773] sm:$0xff]
  %v775 = vld [vmem:[%s773 + $0x8] sm:$0xff]
  %v776 = vld [vmem:[%s773 + $0x10] sm:$0xff]
  %v777 = vld [vmem:[%s773 + $0x18] sm:$0xff]
  %v778 = vld [vmem:[%s773 + $0x20] sm:$0xff]
  %v779 = vld [vmem:[%s773 + $0x28] sm:$0xff]
  %v780 = vld [vmem:[%s773 + $0x30] sm:$0xff]
  %v781 = vld [vmem:[%s773 + $0x38] sm:$0xff]
  %v782 = vld [vmem:[%s773 + $0x40] sm:$0xff]
  %v783 = vld [vmem:[%s773 + $0x48] sm:$0xff]
  %v784 = vld [vmem:[%s773 + $0x50] sm:$0xff]
  %v785 = vld [vmem:[%s773 + $0x58] sm:$0xff]
  %v786 = vld [vmem:[%s773 + $0x60] sm:$0xff]
  %v787 = vld [vmem:[%s773 + $0x68] sm:$0xff]
  %v788 = vld [vmem:[%s773 + $0x70] sm:$0xff]
  %v789 = vld [vmem:[%s773 + $0x78] sm:$0xff]
  %v790 = vld [vmem:[%s773 + $0x80] sm:$0x1]
  %v791 = vld [vmem:[%s773 + $0x88] sm:$0xff]
  %v792 = vld [vmem:[%s773 + $0x90] sm:$0xff]
  %v793 = vld [vmem:[%s773 + $0x98] sm:$0xff]
  %v794 = vld [vmem:[%s773 + $0xa0] sm:$0xff]
  %v795 = vld [vmem:[%s773 + $0xa8] sm:$0xff]
  %v796 = vld [vmem:[%s773 + $0xb0] sm:$0xff]
  %v797 = vld [vmem:[%s773 + $0xb8] sm:$0xff]
  %v798 = vld [vmem:[%s773 + $0xc0] sm:$0xff]
  %v800 = vrot.slane %v772, 6
  %801 = vrot.lane.b32.xlu0 %v800, 64
  %v802 = vpop.permute.xlu0 %801
  %v804 = vsel %vm224, %v223, %v802
  %v805 = vrot.slane %v693, 2
  %806 = vrot.lane.b32.xlu0 %v805, 64
  %v807 = vpop.permute.xlu0 %806
  %v809 = vsel %vm224, %v302, %v807
  %v810 = vrot.slane %v614, 6
  %811 = vrot.lane.b32.xlu0 %v810, 64
  %v812 = vpop.permute.xlu0 %811
  %v814 = vsel %vm224, %v381, %v812
  %v815 = vrot.slane %v536, 2
  %816 = vrot.lane.b32.xlu0 %v815, 64
  %v817 = vpop.permute.xlu0 %816
  %v819 = vsel %vm224, %v460, %v817
  %820 = vrot.lane.b32.xlu0 %v462, 64
  %v821 = vpop.permute.xlu0 %820
  %v823 = vsel %vm224, %v536, %v821
  %v824 = vrot.slane %v381, 2
  %825 = vrot.lane.b32.xlu0 %v824, 64
  %v826 = vpop.permute.xlu0 %825
  %v828 = vsel %vm224, %v614, %v826
  %v829 = vrot.slane %v302, 6
  %830 = vrot.lane.b32.xlu0 %v829, 64
  %v831 = vpop.permute.xlu0 %830
  %v833 = vsel %vm224, %v693, %v831
  %v834 = vrot.slane %v223, 2
  %835 = vrot.lane.b32.xlu0 %v834, 64
  %v836 = vpop.permute.xlu0 %835
  %v838 = vsel %vm224, %v772, %v836
  %v839 = vsel %vm128, %v804, %v809
  %v840 = vsel %vm130, %v839, %v814
  %v841 = vsel %vm132, %v840, %v819
  %v842 = vsel %vm128, %v823, %v828
  %v843 = vsel %vm130, %v842, %v833
  %v844 = vsel %vm132, %v843, %v838
  %v845 = vlaneseq
  %v846 = vshrl.u32 %v845, 7
  %v847 = vsub.s32 0, %v846
  %v848 = vrot.slane %v790, %v847
  %849 = vmatprep.subr.mxu0 0.0
  %850 = vmatpush1.msra.mxu0 %v774
  %851 = vmatprep.subr.mxu0 0.0
  %852 = vmatpush1.msra.mxu0 %v775
  %853 = vmatprep.subr.mxu0 0.0
  %854 = vmatpush1.msra.mxu0 %v776
  %855 = vmatprep.subr.mxu0 0.0
  %856 = vmatpush1.msra.mxu0 %v777
  %857 = vmatprep.subr.mxu0 0.0
  %858 = vmatpush1.msra.mxu0 %v778
  %859 = vmatprep.subr.mxu0 0.0
  %860 = vmatpush1.msra.mxu0 %v779
  %861 = vmatprep.subr.mxu0 0.0
  %862 = vmatpush1.msra.mxu0 %v780
  %863 = vmatprep.subr.mxu0 0.0
  %864 = vmatpush1.msra.mxu0 %v781
  %865 = vmatprep.subr.mxu0 0.0
  %866 = vmatpush1.msra.mxu0 %v782
  %867 = vmatprep.subr.mxu0 0.0
  %868 = vmatpush1.msra.mxu0 %v783
  %869 = vmatprep.subr.mxu0 0.0
  %870 = vmatpush1.msra.mxu0 %v784
  %871 = vmatprep.subr.mxu0 0.0
  %872 = vmatpush1.msra.mxu0 %v785
  %873 = vmatprep.subr.mxu0 0.0
  %874 = vmatpush1.msra.mxu0 %v786
  %875 = vmatprep.subr.mxu0 0.0
  %876 = vmatpush1.msra.mxu0 %v787
  %877 = vmatprep.subr.mxu0 0.0
  %878 = vmatpush1.msra.mxu0 %v788
  %879 = vmatprep.subr.mxu0 0.0
  %880 = vmatpush1.msra.mxu0 %v789
  %881 = vmatprep.subr.mxu0 0.0
  %882 = vmatpush1.msra.mxu0 0.0
  %883 = vmatprep.subr.mxu0 0.0
  %884 = vmatpush1.msra.mxu0 0.0
  %885 = vmatprep.subr.mxu0 0.0
  %886 = vmatpush1.msra.mxu0 0.0
  %887 = vmatprep.subr.mxu0 0.0
  %888 = vmatpush1.msra.mxu0 0.0
  %889 = vmatprep.subr.mxu0 0.0
  %890 = vmatpush1.msra.mxu0 0.0
  %891 = vmatprep.subr.mxu0 0.0
  %892 = vmatpush1.msra.mxu0 0.0
  %893 = vmatprep.subr.mxu0 0.0
  %894 = vmatpush1.msra.mxu0 0.0
  %895 = vmatprep.subr.mxu0 0.0
  %896 = vmatpush1.msra.mxu0 0.0
  %897 = vmatprep.subr.mxu0 0.0
  %898 = vmatpush1.msra.mxu0 0.0
  %899 = vmatprep.subr.mxu0 0.0
  %900 = vmatpush1.msra.mxu0 0.0
  %901 = vmatprep.subr.mxu0 0.0
  %902 = vmatpush1.msra.mxu0 0.0
  %903 = vmatprep.subr.mxu0 0.0
  %904 = vmatpush1.msra.mxu0 0.0
  %905 = vmatprep.subr.mxu0 0.0
  %906 = vmatpush1.msra.mxu0 0.0
  %907 = vmatprep.subr.mxu0 0.0
  %908 = vmatpush1.msra.mxu0 0.0
  %909 = vmatprep.subr.mxu0 0.0
  %910 = vmatpush1.msra.mxu0 0.0
  %911 = vmatprep.subr.mxu0 0.0
  %912 = vmatpush1.msra.mxu0 0.0
  %913 = vmatprep.mubr.f32.mxu0 0.0
  %914 = vmatmul.mubr.f32.gmra.mrb[0].mxu0 %v841
  %v915 = vpop.f32.mrb[0].mxu0
  %v916 = vadd.f32 %v848, %v915
  %v917 = vpop.f32.mrb[0].mxu0
  %918 = vmatprep.mubr.f32.mxu0 0.0
  %919 = vmatmul.mubr.f32.gmra.mrb[0].mxu0 %v844
  %v920 = vpop.f32.mrb[0].mxu0
  %v921 = vadd.f32 %v848, %v920
  %v922 = vpop.f32.mrb[0].mxu0
  %923 = vdwg.mxu0
  %v924 = vtanh.pop %v916
  %v926 = vsel %vm224, %v924, 0
  %928 = vmatprep.subr.mxu0 0.0
  %929 = vmatpush1.msra.mxu0 %v791
  %930 = vmatprep.subr.mxu0 0.0
  %931 = vmatpush1.msra.mxu0 %v792
  %932 = vmatprep.subr.mxu0 0.0
  %933 = vmatpush1.msra.mxu0 %v793
  %934 = vmatprep.subr.mxu0 0.0
  %935 = vmatpush1.msra.mxu0 %v794
  %936 = vmatprep.subr.mxu0 0.0
  %937 = vmatpush1.msra.mxu0 %v795
  %938 = vmatprep.subr.mxu0 0.0
  %939 = vmatpush1.msra.mxu0 %v796
  %940 = vmatprep.subr.mxu0 0.0
  %941 = vmatpush1.msra.mxu0 %v797
  %942 = vmatprep.subr.mxu0 0.0
  %943 = vmatpush1.msra.mxu0 %v798
  %944 = vmatprep.subr.mxu0 0.0
  %945 = vmatpush1.msra.mxu0 0.0
  %946 = vmatprep.subr.mxu0 0.0
  %947 = vmatpush1.msra.mxu0 0.0
  %948 = vmatprep.subr.mxu0 0.0
  %949 = vmatpush1.msra.mxu0 0.0
  %950 = vmatprep.subr.mxu0 0.0
  %951 = vmatpush1.msra.mxu0 0.0
  %952 = vmatprep.subr.mxu0 0.0
  %953 = vmatpush1.msra.mxu0 0.0
  %954 = vmatprep.subr.mxu0 0.0
  %955 = vmatpush1.msra.mxu0 0.0
  %956 = vmatprep.subr.mxu0 0.0
  %957 = vmatpush1.msra.mxu0 0.0
  %958 = vmatprep.subr.mxu0 0.0
  %959 = vmatpush1.msra.mxu0 0.0
  %960 = vmatprep.subr.mxu0 0.0
  %961 = vmatpush1.msra.mxu0 0.0
  %962 = vmatprep.subr.mxu0 0.0
  %963 = vmatpush1.msra.mxu0 0.0
  %964 = vmatprep.subr.mxu0 0.0
  %965 = vmatpush1.msra.mxu0 0.0
  %966 = vmatprep.subr.mxu0 0.0
  %967 = vmatpush1.msra.mxu0 0.0
  %968 = vmatprep.subr.mxu0 0.0
  %969 = vmatpush1.msra.mxu0 0.0
  %970 = vmatprep.subr.mxu0 0.0
  %971 = vmatpush1.msra.mxu0 0.0
  %972 = vmatprep.subr.mxu0 0.0
  %973 = vmatpush1.msra.mxu0 0.0
  %974 = vmatprep.subr.mxu0 0.0
  %975 = vmatpush1.msra.mxu0 0.0
  %976 = vmatprep.subr.mxu0 0.0
  %977 = vmatpush1.msra.mxu0 0.0
  %978 = vmatprep.subr.mxu0 0.0
  %979 = vmatpush1.msra.mxu0 0.0
  %980 = vmatprep.subr.mxu0 0.0
  %981 = vmatpush1.msra.mxu0 0.0
  %982 = vmatprep.subr.mxu0 0.0
  %983 = vmatpush1.msra.mxu0 0.0
  %984 = vmatprep.subr.mxu0 0.0
  %985 = vmatpush1.msra.mxu0 0.0
  %986 = vmatprep.subr.mxu0 0.0
  %987 = vmatpush1.msra.mxu0 0.0
  %988 = vmatprep.subr.mxu0 0.0
  %989 = vmatpush1.msra.mxu0 0.0
  %990 = vmatprep.subr.mxu0 0.0
  %991 = vmatpush1.msra.mxu0 0.0
  %992 = vmatprep.mubr.f32.mxu0 0.0
  %993 = vmatmul.mubr.f32.gmra.mrb[0].mxu0 %v926
  %v994 = vpop.f32.mrb[0].mxu0
  %v995 = vadd.f32 0.0, %v994
  %v996 = vpop.f32.mrb[0].mxu0
  %997 = vdwg.mxu0
  %v999 = vrot.slane %v995, 6
  %v1001 = vadd.f32 %v916, %v999
  %v1002 = vtanh.pop %v1001
  %v1004 = vrot.slane %v1002, 2
  %v1005 = vsel %vm224, %v1004, 0
  %1007 = vmatprep.subr.mxu0 0.0
  %1008 = vmatpush1.msra.mxu0 %v791
  %1009 = vmatprep.subr.mxu0 0.0
  %1010 = vmatpush1.msra.mxu0 %v792
  %1011 = vmatprep.subr.mxu0 0.0
  %1012 = vmatpush1.msra.mxu0 %v793
  %1013 = vmatprep.subr.mxu0 0.0
  %1014 = vmatpush1.msra.mxu0 %v794
  %1015 = vmatprep.subr.mxu0 0.0
  %1016 = vmatpush1.msra.mxu0 %v795
  %1017 = vmatprep.subr.mxu0 0.0
  %1018 = vmatpush1.msra.mxu0 %v796
  %1019 = vmatprep.subr.mxu0 0.0
  %1020 = vmatpush1.msra.mxu0 %v797
  %1021 = vmatprep.subr.mxu0 0.0
  %1022 = vmatpush1.msra.mxu0 %v798
  %1023 = vmatprep.subr.mxu0 0.0
  %1024 = vmatpush1.msra.mxu0 0.0
  %1025 = vmatprep.subr.mxu0 0.0
  %1026 = vmatpush1.msra.mxu0 0.0
  %1027 = vmatprep.subr.mxu0 0.0
  %1028 = vmatpush1.msra.mxu0 0.0
  %1029 = vmatprep.subr.mxu0 0.0
  %1030 = vmatpush1.msra.mxu0 0.0
  %1031 = vmatprep.subr.mxu0 0.0
  %1032 = vmatpush1.msra.mxu0 0.0
  %1033 = vmatprep.subr.mxu0 0.0
  %1034 = vmatpush1.msra.mxu0 0.0
  %1035 = vmatprep.subr.mxu0 0.0
  %1036 = vmatpush1.msra.mxu0 0.0
  %1037 = vmatprep.subr.mxu0 0.0
  %1038 = vmatpush1.msra.mxu0 0.0
  %1039 = vmatprep.subr.mxu0 0.0
  %1040 = vmatpush1.msra.mxu0 0.0
  %1041 = vmatprep.subr.mxu0 0.0
  %1042 = vmatpush1.msra.mxu0 0.0
  %1043 = vmatprep.subr.mxu0 0.0
  %1044 = vmatpush1.msra.mxu0 0.0
  %1045 = vmatprep.subr.mxu0 0.0
  %1046 = vmatpush1.msra.mxu0 0.0
  %1047 = vmatprep.subr.mxu0 0.0
  %1048 = vmatpush1.msra.mxu0 0.0
  %1049 = vmatprep.subr.mxu0 0.0
  %1050 = vmatpush1.msra.mxu0 0.0
  %1051 = vmatprep.subr.mxu0 0.0
  %1052 = vmatpush1.msra.mxu0 0.0
  %1053 = vmatprep.subr.mxu0 0.0
  %1054 = vmatpush1.msra.mxu0 0.0
  %1055 = vmatprep.subr.mxu0 0.0
  %1056 = vmatpush1.msra.mxu0 0.0
  %1057 = vmatprep.subr.mxu0 0.0
  %1058 = vmatpush1.msra.mxu0 0.0
  %1059 = vmatprep.subr.mxu0 0.0
  %1060 = vmatpush1.msra.mxu0 0.0
  %1061 = vmatprep.subr.mxu0 0.0
  %1062 = vmatpush1.msra.mxu0 0.0
  %1063 = vmatprep.subr.mxu0 0.0
  %1064 = vmatpush1.msra.mxu0 0.0
  %1065 = vmatprep.subr.mxu0 0.0
  %1066 = vmatpush1.msra.mxu0 0.0
  %1067 = vmatprep.subr.mxu0 0.0
  %1068 = vmatpush1.msra.mxu0 0.0
  %1069 = vmatprep.subr.mxu0 0.0
  %1070 = vmatpush1.msra.mxu0 0.0
  %1071 = vmatprep.mubr.f32.mxu0 0.0
  %1072 = vmatmul.mubr.f32.gmra.mrb[0].mxu0 %v1005
  %v1073 = vpop.f32.mrb[0].mxu0
  %v1074 = vadd.f32 0.0, %v1073
  %v1075 = vpop.f32.mrb[0].mxu0
  %1076 = vdwg.mxu0
  %v1078 = vrot.slane %v1074, 4
  %v1080 = vadd.f32 %v916, %v1078
  %v1081 = vtanh.pop %v1080
  %v1083 = vrot.slane %v1081, 4
  %v1084 = vsel %vm224, %v1083, 0
  %1086 = vmatprep.subr.mxu0 0.0
  %1087 = vmatpush1.msra.mxu0 %v791
  %1088 = vmatprep.subr.mxu0 0.0
  %1089 = vmatpush1.msra.mxu0 %v792
  %1090 = vmatprep.subr.mxu0 0.0
  %1091 = vmatpush1.msra.mxu0 %v793
  %1092 = vmatprep.subr.mxu0 0.0
  %1093 = vmatpush1.msra.mxu0 %v794
  %1094 = vmatprep.subr.mxu0 0.0
  %1095 = vmatpush1.msra.mxu0 %v795
  %1096 = vmatprep.subr.mxu0 0.0
  %1097 = vmatpush1.msra.mxu0 %v796
  %1098 = vmatprep.subr.mxu0 0.0
  %1099 = vmatpush1.msra.mxu0 %v797
  %1100 = vmatprep.subr.mxu0 0.0
  %1101 = vmatpush1.msra.mxu0 %v798
  %1102 = vmatprep.subr.mxu0 0.0
  %1103 = vmatpush1.msra.mxu0 0.0
  %1104 = vmatprep.subr.mxu0 0.0
  %1105 = vmatpush1.msra.mxu0 0.0
  %1106 = vmatprep.subr.mxu0 0.0
  %1107 = vmatpush1.msra.mxu0 0.0
  %1108 = vmatprep.subr.mxu0 0.0
  %1109 = vmatpush1.msra.mxu0 0.0
  %1110 = vmatprep.subr.mxu0 0.0
  %1111 = vmatpush1.msra.mxu0 0.0
  %1112 = vmatprep.subr.mxu0 0.0
  %1113 = vmatpush1.msra.mxu0 0.0
  %1114 = vmatprep.subr.mxu0 0.0
  %1115 = vmatpush1.msra.mxu0 0.0
  %1116 = vmatprep.subr.mxu0 0.0
  %1117 = vmatpush1.msra.mxu0 0.0
  %1118 = vmatprep.subr.mxu0 0.0
  %1119 = vmatpush1.msra.mxu0 0.0
  %1120 = vmatprep.subr.mxu0 0.0
  %1121 = vmatpush1.msra.mxu0 0.0
  %1122 = vmatprep.subr.mxu0 0.0
  %1123 = vmatpush1.msra.mxu0 0.0
  %1124 = vmatprep.subr.mxu0 0.0
  %1125 = vmatpush1.msra.mxu0 0.0
  %1126 = vmatprep.subr.mxu0 0.0
  %1127 = vmatpush1.msra.mxu0 0.0
  %1128 = vmatprep.subr.mxu0 0.0
  %1129 = vmatpush1.msra.mxu0 0.0
  %1130 = vmatprep.subr.mxu0 0.0
  %1131 = vmatpush1.msra.mxu0 0.0
  %1132 = vmatprep.subr.mxu0 0.0
  %1133 = vmatpush1.msra.mxu0 0.0
  %1134 = vmatprep.subr.mxu0 0.0
  %1135 = vmatpush1.msra.mxu0 0.0
  %1136 = vmatprep.subr.mxu0 0.0
  %1137 = vmatpush1.msra.mxu0 0.0
  %1138 = vmatprep.subr.mxu0 0.0
  %1139 = vmatpush1.msra.mxu0 0.0
  %1140 = vmatprep.subr.mxu0 0.0
  %1141 = vmatpush1.msra.mxu0 0.0
  %1142 = vmatprep.subr.mxu0 0.0
  %1143 = vmatpush1.msra.mxu0 0.0
  %1144 = vmatprep.subr.mxu0 0.0
  %1145 = vmatpush1.msra.mxu0 0.0
  %1146 = vmatprep.subr.mxu0 0.0
  %1147 = vmatpush1.msra.mxu0 0.0
  %1148 = vmatprep.subr.mxu0 0.0
  %1149 = vmatpush1.msra.mxu0 0.0
  %1150 = vmatprep.mubr.f32.mxu0 0.0
  %1151 = vmatmul.mubr.f32.gmra.mrb[0].mxu0 %v1084
  %v1152 = vpop.f32.mrb[0].mxu0
  %v1153 = vadd.f32 0.0, %v1152
  %v1154 = vpop.f32.mrb[0].mxu0
  %1155 = vdwg.mxu0
  %v1157 = vrot.slane %v1153, 2
  %v1159 = vadd.f32 %v916, %v1157
  %v1160 = vtanh.pop %v1159
  %v1162 = vrot.slane %v1160, 6
  %v1163 = vsel %vm224, %v1162, 0
  %1165 = vmatprep.subr.mxu0 0.0
  %1166 = vmatpush1.msra.mxu0 %v791
  %1167 = vmatprep.subr.mxu0 0.0
  %1168 = vmatpush1.msra.mxu0 %v792
  %1169 = vmatprep.subr.mxu0 0.0
  %1170 = vmatpush1.msra.mxu0 %v793
  %1171 = vmatprep.subr.mxu0 0.0
  %1172 = vmatpush1.msra.mxu0 %v794
  %1173 = vmatprep.subr.mxu0 0.0
  %1174 = vmatpush1.msra.mxu0 %v795
  %1175 = vmatprep.subr.mxu0 0.0
  %1176 = vmatpush1.msra.mxu0 %v796
  %1177 = vmatprep.subr.mxu0 0.0
  %1178 = vmatpush1.msra.mxu0 %v797
  %1179 = vmatprep.subr.mxu0 0.0
  %1180 = vmatpush1.msra.mxu0 %v798
  %1181 = vmatprep.subr.mxu0 0.0
  %1182 = vmatpush1.msra.mxu0 0.0
  %1183 = vmatprep.subr.mxu0 0.0
  %1184 = vmatpush1.msra.mxu0 0.0
  %1185 = vmatprep.subr.mxu0 0.0
  %1186 = vmatpush1.msra.mxu0 0.0
  %1187 = vmatprep.subr.mxu0 0.0
  %1188 = vmatpush1.msra.mxu0 0.0
  %1189 = vmatprep.subr.mxu0 0.0
  %1190 = vmatpush1.msra.mxu0 0.0
  %1191 = vmatprep.subr.mxu0 0.0
  %1192 = vmatpush1.msra.mxu0 0.0
  %1193 = vmatprep.subr.mxu0 0.0
  %1194 = vmatpush1.msra.mxu0 0.0
  %1195 = vmatprep.subr.mxu0 0.0
  %1196 = vmatpush1.msra.mxu0 0.0
  %1197 = vmatprep.subr.mxu0 0.0
  %1198 = vmatpush1.msra.mxu0 0.0
  %1199 = vmatprep.subr.mxu0 0.0
  %1200 = vmatpush1.msra.mxu0 0.0
  %1201 = vmatprep.subr.mxu0 0.0
  %1202 = vmatpush1.msra.mxu0 0.0
  %1203 = vmatprep.subr.mxu0 0.0
  %1204 = vmatpush1.msra.mxu0 0.0
  %1205 = vmatprep.subr.mxu0 0.0
  %1206 = vmatpush1.msra.mxu0 0.0
  %1207 = vmatprep.subr.mxu0 0.0
  %1208 = vmatpush1.msra.mxu0 0.0
  %1209 = vmatprep.subr.mxu0 0.0
  %1210 = vmatpush1.msra.mxu0 0.0
  %1211 = vmatprep.subr.mxu0 0.0
  %1212 = vmatpush1.msra.mxu0 0.0
  %1213 = vmatprep.subr.mxu0 0.0
  %1214 = vmatpush1.msra.mxu0 0.0
  %1215 = vmatprep.subr.mxu0 0.0
  %1216 = vmatpush1.msra.mxu0 0.0
  %1217 = vmatprep.subr.mxu0 0.0
  %1218 = vmatpush1.msra.mxu0 0.0
  %1219 = vmatprep.subr.mxu0 0.0
  %1220 = vmatpush1.msra.mxu0 0.0
  %1221 = vmatprep.subr.mxu0 0.0
  %1222 = vmatpush1.msra.mxu0 0.0
  %1223 = vmatprep.subr.mxu0 0.0
  %1224 = vmatpush1.msra.mxu0 0.0
  %1225 = vmatprep.subr.mxu0 0.0
  %1226 = vmatpush1.msra.mxu0 0.0
  %1227 = vmatprep.subr.mxu0 0.0
  %1228 = vmatpush1.msra.mxu0 0.0
  %1229 = vmatprep.mubr.f32.mxu0 0.0
  %1230 = vmatmul.mubr.f32.gmra.mrb[0].mxu0 %v1163
  %v1231 = vpop.f32.mrb[0].mxu0
  %v1232 = vadd.f32 0.0, %v1231
  %v1233 = vpop.f32.mrb[0].mxu0
  %1234 = vdwg.mxu0
  %v1235 = vadd.f32 %v921, %v1232
  %v1236 = vtanh.pop %v1235
  %v1238 = vsel %vm224, %v1236, 0
  %1240 = vmatprep.subr.mxu0 0.0
  %1241 = vmatpush1.msra.mxu0 %v791
  %1242 = vmatprep.subr.mxu0 0.0
  %1243 = vmatpush1.msra.mxu0 %v792
  %1244 = vmatprep.subr.mxu0 0.0
  %1245 = vmatpush1.msra.mxu0 %v793
  %1246 = vmatprep.subr.mxu0 0.0
  %1247 = vmatpush1.msra.mxu0 %v794
  %1248 = vmatprep.subr.mxu0 0.0
  %1249 = vmatpush1.msra.mxu0 %v795
  %1250 = vmatprep.subr.mxu0 0.0
  %1251 = vmatpush1.msra.mxu0 %v796
  %1252 = vmatprep.subr.mxu0 0.0
  %1253 = vmatpush1.msra.mxu0 %v797
  %1254 = vmatprep.subr.mxu0 0.0
  %1255 = vmatpush1.msra.mxu0 %v798
  %1256 = vmatprep.subr.mxu0 0.0
  %1257 = vmatpush1.msra.mxu0 0.0
  %1258 = vmatprep.subr.mxu0 0.0
  %1259 = vmatpush1.msra.mxu0 0.0
  %1260 = vmatprep.subr.mxu0 0.0
  %1261 = vmatpush1.msra.mxu0 0.0
  %1262 = vmatprep.subr.mxu0 0.0
  %1263 = vmatpush1.msra.mxu0 0.0
  %1264 = vmatprep.subr.mxu0 0.0
  %1265 = vmatpush1.msra.mxu0 0.0
  %1266 = vmatprep.subr.mxu0 0.0
  %1267 = vmatpush1.msra.mxu0 0.0
  %1268 = vmatprep.subr.mxu0 0.0
  %1269 = vmatpush1.msra.mxu0 0.0
  %1270 = vmatprep.subr.mxu0 0.0
  %1271 = vmatpush1.msra.mxu0 0.0
  %1272 = vmatprep.subr.mxu0 0.0
  %1273 = vmatpush1.msra.mxu0 0.0
  %1274 = vmatprep.subr.mxu0 0.0
  %1275 = vmatpush1.msra.mxu0 0.0
  %1276 = vmatprep.subr.mxu0 0.0
  %1277 = vmatpush1.msra.mxu0 0.0
  %1278 = vmatprep.subr.mxu0 0.0
  %1279 = vmatpush1.msra.mxu0 0.0
  %1280 = vmatprep.subr.mxu0 0.0
  %1281 = vmatpush1.msra.mxu0 0.0
  %1282 = vmatprep.subr.mxu0 0.0
  %1283 = vmatpush1.msra.mxu0 0.0
  %1284 = vmatprep.subr.mxu0 0.0
  %1285 = vmatpush1.msra.mxu0 0.0
  %1286 = vmatprep.subr.mxu0 0.0
  %1287 = vmatpush1.msra.mxu0 0.0
  %1288 = vmatprep.subr.mxu0 0.0
  %1289 = vmatpush1.msra.mxu0 0.0
  %1290 = vmatprep.subr.mxu0 0.0
  %1291 = vmatpush1.msra.mxu0 0.0
  %1292 = vmatprep.subr.mxu0 0.0
  %1293 = vmatpush1.msra.mxu0 0.0
  %1294 = vmatprep.subr.mxu0 0.0
  %1295 = vmatpush1.msra.mxu0 0.0
  %1296 = vmatprep.subr.mxu0 0.0
  %1297 = vmatpush1.msra.mxu0 0.0
  %1298 = vmatprep.subr.mxu0 0.0
  %1299 = vmatpush1.msra.mxu0 0.0
  %1300 = vmatprep.subr.mxu0 0.0
  %1301 = vmatpush1.msra.mxu0 0.0
  %1302 = vmatprep.subr.mxu0 0.0
  %1303 = vmatpush1.msra.mxu0 0.0
  %1304 = vmatprep.mubr.f32.mxu0 0.0
  %1305 = vmatmul.mubr.f32.gmra.mrb[0].mxu0 %v1238
  %v1306 = vpop.f32.mrb[0].mxu0
  %v1307 = vadd.f32 0.0, %v1306
  %v1308 = vpop.f32.mrb[0].mxu0
  %1309 = vdwg.mxu0
  %v1311 = vrot.slane %v1307, 6
  %v1313 = vadd.f32 %v921, %v1311
  %v1314 = vtanh.pop %v1313
  %v1316 = vrot.slane %v1314, 2
  %v1317 = vsel %vm224, %v1316, 0
  %1319 = vmatprep.subr.mxu0 0.0
  %1320 = vmatpush1.msra.mxu0 %v791
  %1321 = vmatprep.subr.mxu0 0.0
  %1322 = vmatpush1.msra.mxu0 %v792
  %1323 = vmatprep.subr.mxu0 0.0
  %1324 = vmatpush1.msra.mxu0 %v793
  %1325 = vmatprep.subr.mxu0 0.0
  %1326 = vmatpush1.msra.mxu0 %v794
  %1327 = vmatprep.subr.mxu0 0.0
  %1328 = vmatpush1.msra.mxu0 %v795
  %1329 = vmatprep.subr.mxu0 0.0
  %1330 = vmatpush1.msra.mxu0 %v796
  %1331 = vmatprep.subr.mxu0 0.0
  %1332 = vmatpush1.msra.mxu0 %v797
  %1333 = vmatprep.subr.mxu0 0.0
  %1334 = vmatpush1.msra.mxu0 %v798
  %1335 = vmatprep.subr.mxu0 0.0
  %1336 = vmatpush1.msra.mxu0 0.0
  %1337 = vmatprep.subr.mxu0 0.0
  %1338 = vmatpush1.msra.mxu0 0.0
  %1339 = vmatprep.subr.mxu0 0.0
  %1340 = vmatpush1.msra.mxu0 0.0
  %1341 = vmatprep.subr.mxu0 0.0
  %1342 = vmatpush1.msra.mxu0 0.0
  %1343 = vmatprep.subr.mxu0 0.0
  %1344 = vmatpush1.msra.mxu0 0.0
  %1345 = vmatprep.subr.mxu0 0.0
  %1346 = vmatpush1.msra.mxu0 0.0
  %1347 = vmatprep.subr.mxu0 0.0
  %1348 = vmatpush1.msra.mxu0 0.0
  %1349 = vmatprep.subr.mxu0 0.0
  %1350 = vmatpush1.msra.mxu0 0.0
  %1351 = vmatprep.subr.mxu0 0.0
  %1352 = vmatpush1.msra.mxu0 0.0
  %1353 = vmatprep.subr.mxu0 0.0
  %1354 = vmatpush1.msra.mxu0 0.0
  %1355 = vmatprep.subr.mxu0 0.0
  %1356 = vmatpush1.msra.mxu0 0.0
  %1357 = vmatprep.subr.mxu0 0.0
  %1358 = vmatpush1.msra.mxu0 0.0
  %1359 = vmatprep.subr.mxu0 0.0
  %1360 = vmatpush1.msra.mxu0 0.0
  %1361 = vmatprep.subr.mxu0 0.0
  %1362 = vmatpush1.msra.mxu0 0.0
  %1363 = vmatprep.subr.mxu0 0.0
  %1364 = vmatpush1.msra.mxu0 0.0
  %1365 = vmatprep.subr.mxu0 0.0
  %1366 = vmatpush1.msra.mxu0 0.0
  %1367 = vmatprep.subr.mxu0 0.0
  %1368 = vmatpush1.msra.mxu0 0.0
  %1369 = vmatprep.subr.mxu0 0.0
  %1370 = vmatpush1.msra.mxu0 0.0
  %1371 = vmatprep.subr.mxu0 0.0
  %1372 = vmatpush1.msra.mxu0 0.0
  %1373 = vmatprep.subr.mxu0 0.0
  %1374 = vmatpush1.msra.mxu0 0.0
  %1375 = vmatprep.subr.mxu0 0.0
  %1376 = vmatpush1.msra.mxu0 0.0
  %1377 = vmatprep.subr.mxu0 0.0
  %1378 = vmatpush1.msra.mxu0 0.0
  %1379 = vmatprep.subr.mxu0 0.0
  %1380 = vmatpush1.msra.mxu0 0.0
  %1381 = vmatprep.subr.mxu0 0.0
  %1382 = vmatpush1.msra.mxu0 0.0
  %1383 = vmatprep.mubr.f32.mxu0 0.0
  %1384 = vmatmul.mubr.f32.gmra.mrb[0].mxu0 %v1317
  %v1385 = vpop.f32.mrb[0].mxu0
  %v1386 = vadd.f32 0.0, %v1385
  %v1387 = vpop.f32.mrb[0].mxu0
  %1388 = vdwg.mxu0
  %v1390 = vrot.slane %v1386, 4
  %v1392 = vadd.f32 %v921, %v1390
  %v1393 = vtanh.pop %v1392
  %v1395 = vrot.slane %v1393, 4
  %v1396 = vsel %vm224, %v1395, 0
  %1398 = vmatprep.subr.mxu0 0.0
  %1399 = vmatpush1.msra.mxu0 %v791
  %1400 = vmatprep.subr.mxu0 0.0
  %1401 = vmatpush1.msra.mxu0 %v792
  %1402 = vmatprep.subr.mxu0 0.0
  %1403 = vmatpush1.msra.mxu0 %v793
  %1404 = vmatprep.subr.mxu0 0.0
  %1405 = vmatpush1.msra.mxu0 %v794
  %1406 = vmatprep.subr.mxu0 0.0
  %1407 = vmatpush1.msra.mxu0 %v795
  %1408 = vmatprep.subr.mxu0 0.0
  %1409 = vmatpush1.msra.mxu0 %v796
  %1410 = vmatprep.subr.mxu0 0.0
  %1411 = vmatpush1.msra.mxu0 %v797
  %1412 = vmatprep.subr.mxu0 0.0
  %1413 = vmatpush1.msra.mxu0 %v798
  %1414 = vmatprep.subr.mxu0 0.0
  %1415 = vmatpush1.msra.mxu0 0.0
  %1416 = vmatprep.subr.mxu0 0.0
  %1417 = vmatpush1.msra.mxu0 0.0
  %1418 = vmatprep.subr.mxu0 0.0
  %1419 = vmatpush1.msra.mxu0 0.0
  %1420 = vmatprep.subr.mxu0 0.0
  %1421 = vmatpush1.msra.mxu0 0.0
  %1422 = vmatprep.subr.mxu0 0.0
  %1423 = vmatpush1.msra.mxu0 0.0
  %1424 = vmatprep.subr.mxu0 0.0
  %1425 = vmatpush1.msra.mxu0 0.0
  %1426 = vmatprep.subr.mxu0 0.0
  %1427 = vmatpush1.msra.mxu0 0.0
  %1428 = vmatprep.subr.mxu0 0.0
  %1429 = vmatpush1.msra.mxu0 0.0
  %1430 = vmatprep.subr.mxu0 0.0
  %1431 = vmatpush1.msra.mxu0 0.0
  %1432 = vmatprep.subr.mxu0 0.0
  %1433 = vmatpush1.msra.mxu0 0.0
  %1434 = vmatprep.subr.mxu0 0.0
  %1435 = vmatpush1.msra.mxu0 0.0
  %1436 = vmatprep.subr.mxu0 0.0
  %1437 = vmatpush1.msra.mxu0 0.0
  %1438 = vmatprep.subr.mxu0 0.0
  %1439 = vmatpush1.msra.mxu0 0.0
  %1440 = vmatprep.subr.mxu0 0.0
  %1441 = vmatpush1.msra.mxu0 0.0
  %1442 = vmatprep.subr.mxu0 0.0
  %1443 = vmatpush1.msra.mxu0 0.0
  %1444 = vmatprep.subr.mxu0 0.0
  %1445 = vmatpush1.msra.mxu0 0.0
  %1446 = vmatprep.subr.mxu0 0.0
  %1447 = vmatpush1.msra.mxu0 0.0
  %1448 = vmatprep.subr.mxu0 0.0
  %1449 = vmatpush1.msra.mxu0 0.0
  %1450 = vmatprep.subr.mxu0 0.0
  %1451 = vmatpush1.msra.mxu0 0.0
  %1452 = vmatprep.subr.mxu0 0.0
  %1453 = vmatpush1.msra.mxu0 0.0
  %1454 = vmatprep.subr.mxu0 0.0
  %1455 = vmatpush1.msra.mxu0 0.0
  %1456 = vmatprep.subr.mxu0 0.0
  %1457 = vmatpush1.msra.mxu0 0.0
  %1458 = vmatprep.subr.mxu0 0.0
  %1459 = vmatpush1.msra.mxu0 0.0
  %1460 = vmatprep.subr.mxu0 0.0
  %1461 = vmatpush1.msra.mxu0 0.0
  %1462 = vmatprep.mubr.f32.mxu0 0.0
  %1463 = vmatmul.mubr.f32.gmra.mrb[0].mxu0 %v1396
  %v1464 = vpop.f32.mrb[0].mxu0
  %v1465 = vadd.f32 0.0, %v1464
  %v1466 = vpop.f32.mrb[0].mxu0
  %1467 = vdwg.mxu0
  %v1469 = vrot.slane %v1465, 2
  %v1471 = vadd.f32 %v921, %v1469
  %v1472 = vtanh.pop %v1471
  %v1473 = vld [vmem:[%s2] sm:$0xff]
  %v1474 = vld [vmem:[%s2 + $0x8] sm:$0xff]
  %v1475 = vld [vmem:[%s2 + $0x10] sm:$0xff]
  %v1476 = vld [vmem:[%s2 + $0x18] sm:$0xff]
  %v1477 = vld [vmem:[%s2 + $0x20] sm:$0xff]
  %v1478 = vld [vmem:[%s2 + $0x28] sm:$0xff]
  %v1479 = vld [vmem:[%s2 + $0x30] sm:$0xff]
  %v1480 = vld [vmem:[%s2 + $0x38] sm:$0xff]
  %v1481 = vld [vmem:[%s2 + $0x40] sm:$0xff]
  %v1482 = vld [vmem:[%s2 + $0x48] sm:$0xff]
  %v1483 = vld [vmem:[%s2 + $0x50] sm:$0xff]
  %v1484 = vld [vmem:[%s2 + $0x58] sm:$0xff]
  %v1485 = vld [vmem:[%s2 + $0x60] sm:$0xff]
  %v1486 = vld [vmem:[%s2 + $0x68] sm:$0xff]
  %v1487 = vld [vmem:[%s2 + $0x70] sm:$0xff]
  %v1488 = vld [vmem:[%s2 + $0x78] sm:$0xff]
  %v1489 = vld [vmem:[%s2 + $0x80] sm:$0x1]
  %v1490 = vld [vmem:[%s2 + $0x88] sm:$0xff]
  %v1491 = vld [vmem:[%s2 + $0x90] sm:$0xff]
  %v1492 = vld [vmem:[%s2 + $0x98] sm:$0xff]
  %v1493 = vld [vmem:[%s2 + $0xa0] sm:$0xff]
  %v1494 = vld [vmem:[%s2 + $0xa8] sm:$0x1]
  %v1495 = vrot.slane %v924, 2
  %1496 = vrot.lane.b32.xlu0 %v1495, 64
  %v1497 = vpop.permute.xlu0 %1496
  %v1499 = vsel %vm224, %v1472, %v1497
  %v1500 = vlaneseq
  %v1501 = vshrl.u32 %v1500, 7
  %v1502 = vsub.s32 0, %v1501
  %v1503 = vrot.slane %v1489, %v1502
  %v1505 = vrot.slane %v1499, 6
  %1507 = vmatprep.subr.mxu0 0.0
  %1508 = vmatpush1.msra.mxu0 %v1473
  %1509 = vmatprep.subr.mxu0 0.0
  %1510 = vmatpush1.msra.mxu0 %v1474
  %1511 = vmatprep.subr.mxu0 0.0
  %1512 = vmatpush1.msra.mxu0 %v1475
  %1513 = vmatprep.subr.mxu0 0.0
  %1514 = vmatpush1.msra.mxu0 %v1476
  %1515 = vmatprep.subr.mxu0 0.0
  %1516 = vmatpush1.msra.mxu0 %v1477
  %1517 = vmatprep.subr.mxu0 0.0
  %1518 = vmatpush1.msra.mxu0 %v1478
  %1519 = vmatprep.subr.mxu0 0.0
  %1520 = vmatpush1.msra.mxu0 %v1479
  %1521 = vmatprep.subr.mxu0 0.0
  %1522 = vmatpush1.msra.mxu0 %v1480
  %1523 = vmatprep.subr.mxu0 0.0
  %1524 = vmatpush1.msra.mxu0 %v1481
  %1525 = vmatprep.subr.mxu0 0.0
  %1526 = vmatpush1.msra.mxu0 %v1482
  %1527 = vmatprep.subr.mxu0 0.0
  %1528 = vmatpush1.msra.mxu0 %v1483
  %1529 = vmatprep.subr.mxu0 0.0
  %1530 = vmatpush1.msra.mxu0 %v1484
  %1531 = vmatprep.subr.mxu0 0.0
  %1532 = vmatpush1.msra.mxu0 %v1485
  %1533 = vmatprep.subr.mxu0 0.0
  %1534 = vmatpush1.msra.mxu0 %v1486
  %1535 = vmatprep.subr.mxu0 0.0
  %1536 = vmatpush1.msra.mxu0 %v1487
  %1537 = vmatprep.subr.mxu0 0.0
  %1538 = vmatpush1.msra.mxu0 %v1488
  %1539 = vmatprep.subr.mxu0 0.0
  %1540 = vmatpush1.msra.mxu0 0.0
  %1541 = vmatprep.subr.mxu0 0.0
  %1542 = vmatpush1.msra.mxu0 0.0
  %1543 = vmatprep.subr.mxu0 0.0
  %1544 = vmatpush1.msra.mxu0 0.0
  %1545 = vmatprep.subr.mxu0 0.0
  %1546 = vmatpush1.msra.mxu0 0.0
  %1547 = vmatprep.subr.mxu0 0.0
  %1548 = vmatpush1.msra.mxu0 0.0
  %1549 = vmatprep.subr.mxu0 0.0
  %1550 = vmatpush1.msra.mxu0 0.0
  %1551 = vmatprep.subr.mxu0 0.0
  %1552 = vmatpush1.msra.mxu0 0.0
  %1553 = vmatprep.subr.mxu0 0.0
  %1554 = vmatpush1.msra.mxu0 0.0
  %1555 = vmatprep.subr.mxu0 0.0
  %1556 = vmatpush1.msra.mxu0 0.0
  %1557 = vmatprep.subr.mxu0 0.0
  %1558 = vmatpush1.msra.mxu0 0.0
  %1559 = vmatprep.subr.mxu0 0.0
  %1560 = vmatpush1.msra.mxu0 0.0
  %1561 = vmatprep.subr.mxu0 0.0
  %1562 = vmatpush1.msra.mxu0 0.0
  %1563 = vmatprep.subr.mxu0 0.0
  %1564 = vmatpush1.msra.mxu0 0.0
  %1565 = vmatprep.subr.mxu0 0.0
  %1566 = vmatpush1.msra.mxu0 0.0
  %1567 = vmatprep.subr.mxu0 0.0
  %1568 = vmatpush1.msra.mxu0 0.0
  %1569 = vmatprep.subr.mxu0 0.0
  %1570 = vmatpush1.msra.mxu0 0.0
  %1571 = vmatprep.mubr.f32.mxu0 0.0
  %1572 = vmatmul.mubr.f32.gmra.mrb[0].mxu0 %v1505
  %v1573 = vpop.f32.mrb[0].mxu0
  %v1574 = vadd.f32 %v1503, %v1573
  %v1575 = vpop.f32.mrb[0].mxu0
  %1576 = vdwg.mxu0
  %v1577 = vmax.f32 %v1574, 0.0
  %v1578 = vlaneseq
  %v1579 = vshrl.u32 %v1578, 7
  %v1580 = vsub.s32 0, %v1579
  %v1581 = vrot.slane %v1494, %v1580
  %vm1582 = vcmask 261120
  %v1584 = vsel %vm1582, %v1577, 0
  %1586 = vmatprep.subr.mxu0 0.0
  %1587 = vmatpush1.msra.mxu0 %v1490
  %1588 = vmatprep.subr.mxu0 0.0
  %1589 = vmatpush1.msra.mxu0 %v1491
  %1590 = vmatprep.subr.mxu0 0.0
  %1591 = vmatpush1.msra.mxu0 %v1492
  %1592 = vmatprep.subr.mxu0 0.0
  %1593 = vmatpush1.msra.mxu0 %v1493
  %1594 = vmatprep.subr.mxu0 0.0
  %1595 = vmatpush1.msra.mxu0 0.0
  %1596 = vmatprep.subr.mxu0 0.0
  %1597 = vmatpush1.msra.mxu0 0.0
  %1598 = vmatprep.subr.mxu0 0.0
  %1599 = vmatpush1.msra.mxu0 0.0
  %1600 = vmatprep.subr.mxu0 0.0
  %1601 = vmatpush1.msra.mxu0 0.0
  %1602 = vmatprep.subr.mxu0 0.0
  %1603 = vmatpush1.msra.mxu0 0.0
  %1604 = vmatprep.subr.mxu0 0.0
  %1605 = vmatpush1.msra.mxu0 0.0
  %1606 = vmatprep.subr.mxu0 0.0
  %1607 = vmatpush1.msra.mxu0 0.0
  %1608 = vmatprep.subr.mxu0 0.0
  %1609 = vmatpush1.msra.mxu0 0.0
  %1610 = vmatprep.subr.mxu0 0.0
  %1611 = vmatpush1.msra.mxu0 0.0
  %1612 = vmatprep.subr.mxu0 0.0
  %1613 = vmatpush1.msra.mxu0 0.0
  %1614 = vmatprep.subr.mxu0 0.0
  %1615 = vmatpush1.msra.mxu0 0.0
  %1616 = vmatprep.subr.mxu0 0.0
  %1617 = vmatpush1.msra.mxu0 0.0
  %1618 = vmatprep.subr.mxu0 0.0
  %1619 = vmatpush1.msra.mxu0 0.0
  %1620 = vmatprep.subr.mxu0 0.0
  %1621 = vmatpush1.msra.mxu0 0.0
  %1622 = vmatprep.subr.mxu0 0.0
  %1623 = vmatpush1.msra.mxu0 0.0
  %1624 = vmatprep.subr.mxu0 0.0
  %1625 = vmatpush1.msra.mxu0 0.0
  %1626 = vmatprep.subr.mxu0 0.0
  %1627 = vmatpush1.msra.mxu0 0.0
  %1628 = vmatprep.subr.mxu0 0.0
  %1629 = vmatpush1.msra.mxu0 0.0
  %1630 = vmatprep.subr.mxu0 0.0
  %1631 = vmatpush1.msra.mxu0 0.0
  %1632 = vmatprep.subr.mxu0 0.0
  %1633 = vmatpush1.msra.mxu0 0.0
  %1634 = vmatprep.subr.mxu0 0.0
  %1635 = vmatpush1.msra.mxu0 0.0
  %1636 = vmatprep.subr.mxu0 0.0
  %1637 = vmatpush1.msra.mxu0 0.0
  %1638 = vmatprep.subr.mxu0 0.0
  %1639 = vmatpush1.msra.mxu0 0.0
  %1640 = vmatprep.subr.mxu0 0.0
  %1641 = vmatpush1.msra.mxu0 0.0
  %1642 = vmatprep.subr.mxu0 0.0
  %1643 = vmatpush1.msra.mxu0 0.0
  %1644 = vmatprep.subr.mxu0 0.0
  %1645 = vmatpush1.msra.mxu0 0.0
  %1646 = vmatprep.subr.mxu0 0.0
  %1647 = vmatpush1.msra.mxu0 0.0
  %1648 = vmatprep.subr.mxu0 0.0
  %1649 = vmatpush1.msra.mxu0 0.0
  %1650 = vmatprep.mubr.f32.mxu0 0.0
  %1651 = vmatmul.mubr.f32.gmra.mrb[0].mxu0 %v1584
  %v1652 = vpop.f32.mrb[0].mxu0
  %v1653 = vadd.f32 %v1581, %v1652
  %v1654 = vpop.f32.mrb[0].mxu0
  %1655 = vdwg.mxu0
  %vm1656 = vcmask 1024
  %1657 = vst.msk [vmem:[%s3] sm:$0x3] %vm1656, %v1653
  // Predicated region
  $region14: #{rnn_model_forward.1} parent=0 // pred_check
    _
  $region15: #{rnn_model_forward.1} parent=0 // pred_check_branch
    %1659 = sbr.rel (0) target = $region17
  $region16: #{rnn_model_forward.1} parent=0 // pred_region
    _
  $region17: #{rnn_model_forward.1} parent=0 // pred_fallthru
    _
  // Predicated region
  $region18: #{rnn_model_forward.1} parent=0 // pred_check
    _
  $region19: #{rnn_model_forward.1} parent=0 // pred_check_branch
    %1661 = sbr.rel (0) target = $region21
  $region20: #{rnn_model_forward.1} parent=0 // pred_region
    _
  $region21: #{rnn_model_forward.1} parent=0 // pred_fallthru
    _

</llo_original>
